<compile_context>
chip_gen: v7x
topology: tpu7x:2x2x1
jax: 0.10.0
libtpu: 0.0.40
codegen_flags: <defaults>
</compile_context>

<pallas_src>
import functools

import jax
import jax.numpy as jnp
from jax.experimental import pallas as pl
from jax.experimental.pallas import tpu as pltpu


def _mha_kernel(q_ref, k_ref, v_ref,
                wq_ref, wk_ref, wv_ref, wfc_ref,
                gamma_ref, beta_ref,
                *refs,
                n_head, eps, has_attn, compute_dtype):
    if has_attn:
        out_ref, attn_ref, q_sc, k_sc, v_sc = refs
    else:
        out_ref, q_sc, k_sc, v_sc = refs
        attn_ref = None

    t = pl.program_id(1)

    xq = q_ref[0]                       # (tq, d_model) f32
    residual = xq

    # ---- K/V projections: once per batch (independent of the q-tile). -------
    # Plain 2-D GEMMs per head into persistent head-major VMEM scratch; no
    # broadcast of the activations is materialized.
    @pl.when(t == 0)
    def _():
        xk = k_ref[0]                   # (len_k, d_model)
        xv = v_ref[0]                   # (len_v, d_model)
        for h in range(n_head):         # static unroll; n_head is small
            k_sc[h] = jnp.dot(xk, wk_ref[h],
                              preferred_element_type=jnp.float32).astype(k_sc.dtype)
            v_sc[h] = jnp.dot(xv, wv_ref[h],
                              preferred_element_type=jnp.float32).astype(v_sc.dtype)

    # ---- Q projection for this q-tile (wq already carries 1/sqrt(d_k)). -----
    for h in range(n_head):
        q_sc[h] = jnp.dot(xq, wq_ref[h],
                          preferred_element_type=jnp.float32).astype(q_sc.dtype)

    # ---- Scaled dot-product attention, head-batched. -------------------------
    logits = jnp.einsum('hqi,hki->hqk', q_sc[...], k_sc[...],
                        preferred_element_type=jnp.float32)     # (H, tq, len_k)
    m = jnp.max(logits, axis=-1, keepdims=True)
    e = jnp.exp(logits - m)
    denom = jnp.sum(e, axis=-1, keepdims=True)
    # approx reciprocal on the (otherwise idle) EUP slot + one Newton step;
    # residual error ~eps^2, far below the 1e-3 parity tolerance.
    r = pl.reciprocal(denom, approx=True)
    r = r * (2.0 - denom * r)
    attn = e * r                                                # (H, tq, len_k) f32

    if has_attn:
        # Written directly in the final head-major layout (wrapper reshape is a
        # free view; dtype selectable to halve the dominant HBM write).
        attn_ref[:, 0] = attn.astype(attn_ref.dtype)

    # ---- P @ V, then per-head slice of fc summed over heads (== concat @ W_fc^T).
    pv = jnp.einsum('hqk,hkj->hqj', attn.astype(compute_dtype), v_sc[...],
                    preferred_element_type=jnp.float32)         # (H, tq, d_v)
    ctx = jnp.einsum('hqj,hjm->hqm', pv, wfc_ref[...],
                     preferred_element_type=jnp.float32)        # (H, tq, d_model)
    proj = jnp.sum(ctx, axis=0)                                 # (tq, d_model)

    # TODO(synk): nn.Dropout layers are identity here (eval/inference mode);
    # attn_mask=None and attn_type='softmax' only (sigmoid variant not wired up).

    # ---- Residual add + LayerNorm over the feature dimension. ----------------
    y = proj + residual
    mean = jnp.mean(y, axis=-1, keepdims=True)
    var = jnp.mean((y - mean) ** 2, axis=-1, keepdims=True)
    y_norm = (y - mean) * jax.lax.rsqrt(var + eps)
    out_ref[0] = (y_norm * gamma_ref[0] + beta_ref[0]).astype(out_ref.dtype)


def _pick_q_tile(len_q, cap=256):
    """Largest q-tile <= cap dividing len_q (prefer multiples of 8)."""
    if len_q <= cap:
        return len_q
    best = None
    for t in range(cap, 0, -1):
        if len_q % t == 0:
            if t % 8 == 0:
                return t
            if best is None:
                best = t
    # TODO(synk): pad len_q + mask instead of a degenerate tile for awkward lengths.
    return best if (best is not None and best >= 8) else len_q


def multi_head_attention(q, k, v, wq, wk, wv, wfc, gamma, beta,
                         *, n_head, d_k, d_v, eps=1e-5,
                         compute_dtype=jnp.float32, attn_dtype=jnp.float32,
                         return_attn=True, q_tile_cap=256,
                         vmem_limit_bytes=48 * 1024 * 1024):
    """Pallas implementation of MultiHeadAttention.forward (attn_mask=None, eval).

    Returns (output, attn) like the PyTorch module (attn head-major stacked),
    or just `output` when return_attn=False (skips the O(S^2) HBM write).
    """
    sz_b, len_q, d_model = q.shape
    _, len_k, _ = k.shape
    _, len_v, _ = v.shape
    if len_v != len_k:
        raise ValueError("len_v must equal len_k (required by bmm(attn, v)).")
    if n_head <= 1:
        raise ValueError("This kernel mirrors the module's n_head > 1 path (with fc).")

    # Host-side weight plumbing (done once, outside the kernel): head-major,
    # pre-transposed; softmax temperature folded into W_q.
    scale = 1.0 / (float(d_k) ** 0.5)
    wq3 = (wq * scale).reshape(n_head, d_k, d_model).transpose(0, 2, 1)  # (H, d_model, d_k)
    wk3 = wk.reshape(n_head, d_k, d_model).transpose(0, 2, 1)            # (H, d_model, d_k)
    wv3 = wv.reshape(n_head, d_v, d_model).transpose(0, 2, 1)            # (H, d_model, d_v)
    wfc3 = wfc.T.reshape(n_head, d_v, d_model)                           # (H, d_v, d_model)
    gamma2 = gamma.reshape(1, d_model)
    beta2 = beta.reshape(1, d_model)

    tq = _pick_q_tile(len_q, q_tile_cap)
    n_q_tiles = len_q // tq

    kernel = functools.partial(_mha_kernel, n_head=n_head, eps=eps,
                               has_attn=return_attn, compute_dtype=compute_dtype)

    if return_attn:
        out_shape = (
            jax.ShapeDtypeStruct((sz_b, len_q, d_model), q.dtype),
            # head-major: matches torch's (n_head, sz_b, lq, lk).view(-1, lq, lk)
            jax.ShapeDtypeStruct((n_head, sz_b, len_q, len_k), attn_dtype),
        )
        out_specs = [
            pl.BlockSpec((1, tq, d_model), lambda b, t: (b, t, 0)),
            pl.BlockSpec((n_head, 1, tq, len_k), lambda b, t: (0, b, t, 0)),
        ]
    else:
        out_shape = jax.ShapeDtypeStruct((sz_b, len_q, d_model), q.dtype)
        out_specs = pl.BlockSpec((1, tq, d_model), lambda b, t: (b, t, 0))

    result = pl.pallas_call(
        kernel,
        out_shape=out_shape,
        grid_spec=pltpu.PrefetchScalarGridSpec(
            num_scalar_prefetch=0,
            grid=(sz_b, n_q_tiles),
            in_specs=[
                pl.BlockSpec((1, tq, d_model), lambda b, t: (b, t, 0)),
                pl.BlockSpec((1, len_k, d_model), lambda b, t: (b, 0, 0)),
                pl.BlockSpec((1, len_v, d_model), lambda b, t: (b, 0, 0)),
                pl.BlockSpec((n_head, d_model, d_k), lambda b, t: (0, 0, 0)),
                pl.BlockSpec((n_head, d_model, d_k), lambda b, t: (0, 0, 0)),
                pl.BlockSpec((n_head, d_model, d_v), lambda b, t: (0, 0, 0)),
                pl.BlockSpec((n_head, d_v, d_model), lambda b, t: (0, 0, 0)),
                pl.BlockSpec((1, d_model), lambda b, t: (0, 0)),
                pl.BlockSpec((1, d_model), lambda b, t: (0, 0)),
            ],
            out_specs=out_specs,
            scratch_shapes=[
                pltpu.VMEM((n_head, tq, d_k), compute_dtype),     # Q (per tile)
                pltpu.VMEM((n_head, len_k, d_k), compute_dtype),  # K (per batch)
                pltpu.VMEM((n_head, len_v, d_v), compute_dtype),  # V (per batch)
            ],
        ),
        compiler_params=pltpu.CompilerParams(
            # batch axis parallel (megacore sharding); q-tile axis arbitrary
            # because the K/V scratch computed at t==0 is reused by later tiles.
            dimension_semantics=("parallel", "arbitrary"),
            # v7x-safe (64 MiB physical per TC); raise on v5e/v6e for long seqs.
            vmem_limit_bytes=vmem_limit_bytes),
    )(q, k, v, wq3, wk3, wv3, wfc3, gamma2, beta2)

    if return_attn:
        out, attn = result
        # Already head-major: reshape is a free view, no extra HBM pass.
        return out, attn.reshape(n_head * sz_b, len_q, len_k)
    return result


def _reference(q, k, v, wq, wk, wv, wfc, gamma, beta, n_head, d_k, d_v, eps=1e-5):
    """Pure-JAX reference mirroring the PyTorch forward (eval mode, no mask)."""
    sz_b, len_q, d_model = q.shape
    len_k = k.shape[1]
    residual = q
    qp = (q @ wq.T).reshape(sz_b, len_q, n_head, d_k)
    kp = (k @ wk.T).reshape(sz_b, len_k, n_head, d_k)
    vp = (v @ wv.T).reshape(sz_b, len_k, n_head, d_v)
    qh = jnp.transpose(qp, (2, 0, 1, 3)).reshape(-1, len_q, d_k)
    kh = jnp.transpose(kp, (2, 0, 1, 3)).reshape(-1, len_k, d_k)
    vh = jnp.transpose(vp, (2, 0, 1, 3)).reshape(-1, len_k, d_v)
    logits = jnp.einsum("bqd,bkd->bqk", qh, kh) / jnp.sqrt(jnp.float32(d_k))
    attn = jax.nn.softmax(logits, axis=2)
    out = jnp.einsum("bqk,bkd->bqd", attn, vh)
    out = out.reshape(n_head, sz_b, len_q, d_v)
    out = jnp.transpose(out, (1, 2, 0, 3)).reshape(sz_b, len_q, n_head * d_v)
    out = out @ wfc.T
    y = out + residual
    mean = jnp.mean(y, axis=-1, keepdims=True)
    var = jnp.mean((y - mean) ** 2, axis=-1, keepdims=True)
    y = (y - mean) / jnp.sqrt(var + eps)
    y = y * gamma + beta
    return y, attn


if __name__ == "__main__":
    # Small, deterministic configuration.
    n_head, d_model, d_k, d_v = 4, 32, 8, 8
    sz_b, len_q, len_k = 2, 8, 8

    key = jax.random.PRNGKey(0)
    k1, k2, k3, k4, k5, k6, k7 = jax.random.split(key, 7)

    q = jax.random.normal(k1, (sz_b, len_q, d_model), dtype=jnp.float32)
    k = jax.random.normal(k2, (sz_b, len_k, d_model), dtype=jnp.float32)
    v = jax.random.normal(k3, (sz_b, len_k, d_model), dtype=jnp.float32)

    # Parameter init mirroring the module's __init__ (deterministic, in-script).
    std_qk = (2.0 / (d_model + d_k)) ** 0.5
    std_v = (2.0 / (d_model + d_v)) ** 0.5
    std_fc = (2.0 / (n_head * d_v + d_model)) ** 0.5  # xavier_normal gain=1
    wq = std_qk * jax.random.normal(k4, (n_head * d_k, d_model), dtype=jnp.float32)
    wk = std_qk * jax.random.normal(k5, (n_head * d_k, d_model), dtype=jnp.float32)
    wv = std_v * jax.random.normal(k6, (n_head * d_v, d_model), dtype=jnp.float32)
    wfc = std_fc * jax.random.normal(k7, (d_model, n_head * d_v), dtype=jnp.float32)
    gamma = jnp.ones((d_model,), dtype=jnp.float32)
    beta = jnp.zeros((d_model,), dtype=jnp.float32)

    ref_out, ref_attn = _reference(q, k, v, wq, wk, wv, wfc, gamma, beta,
                                   n_head, d_k, d_v)

    # 1) Strict f32 path (full parity with the PyTorch module).
    out, attn = multi_head_attention(
        q, k, v, wq, wk, wv, wfc, gamma, beta,
        n_head=n_head, d_k=d_k, d_v=d_v)
    out = jax.block_until_ready(out)
    attn = jax.block_until_ready(attn)
    assert out.shape == (sz_b, len_q, d_model)
    assert attn.shape == (n_head * sz_b, len_q, len_k)
    assert jnp.allclose(out, ref_out, atol=1e-3, rtol=1e-3)
    assert jnp.allclose(attn, ref_attn, atol=1e-3, rtol=1e-3)

    # 2) Fast path: bf16 MXU operands for QK^T / PV and bf16 attn-probs output.
    out_bf, attn_bf = multi_head_attention(
        q, k, v, wq, wk, wv, wfc, gamma, beta,
        n_head=n_head, d_k=d_k, d_v=d_v,
        compute_dtype=jnp.bfloat16, attn_dtype=jnp.bfloat16)
    out_bf = jax.block_until_ready(out_bf)
    attn_bf = jax.block_until_ready(attn_bf)
    assert jnp.allclose(out_bf, ref_out, atol=5e-2, rtol=5e-2)
    assert jnp.allclose(attn_bf.astype(jnp.float32), ref_attn, atol=5e-2, rtol=5e-2)

    # 3) Attention-probs output skipped entirely (drops the dominant HBM write).
    out_only = multi_head_attention(
        q, k, v, wq, wk, wv, wfc, gamma, beta,
        n_head=n_head, d_k=d_k, d_v=d_v, return_attn=False)
    out_only = jax.block_until_ready(out_only)
    assert jnp.allclose(out_only, ref_out, atol=1e-3, rtol=1e-3)

    print("KERNEL_OK")
</pallas_src>

<mosaic_0001>
module attributes {stable_mosaic.version = 11 : i64} {
  func.func @_mha_kernel(%arg0: i32, %arg1: i32, %arg2: memref<1x8x32xf32, #tpu.memory_space<vmem>>, %arg3: memref<1x8x32xf32, #tpu.memory_space<vmem>>, %arg4: memref<1x8x32xf32, #tpu.memory_space<vmem>>, %arg5: memref<4x32x8xf32, #tpu.memory_space<vmem>>, %arg6: memref<4x32x8xf32, #tpu.memory_space<vmem>>, %arg7: memref<4x32x8xf32, #tpu.memory_space<vmem>>, %arg8: memref<4x8x32xf32, #tpu.memory_space<vmem>>, %arg9: memref<1x32xf32, #tpu.memory_space<vmem>>, %arg10: memref<1x32xf32, #tpu.memory_space<vmem>>, %arg11: memref<1x8x32xf32, #tpu.memory_space<vmem>>, %arg12: memref<4x1x8x8xf32, #tpu.memory_space<vmem>>, %arg13: memref<4x8x8xf32, #tpu.memory_space<vmem>>, %arg14: memref<4x8x8xf32, #tpu.memory_space<vmem>>, %arg15: memref<4x8x8xf32, #tpu.memory_space<vmem>>) attributes {dimension_semantics = [#tpu.dimension_semantics<parallel>, #tpu.dimension_semantics<arbitrary>], iteration_bounds = array<i64: 2, 1>, scalar_prefetch = 0 : i64, scratch_operands = 3 : i64, tpu.core_type = #tpu.core_type<tc>, window_params = [{transform_indices = @transform_0, window_bounds = array<i64: 1, 8, 32>}, {transform_indices = @transform_1, window_bounds = array<i64: 1, 8, 32>}, {transform_indices = @transform_2, window_bounds = array<i64: 1, 8, 32>}, {pipeline_mode = #tpu.pipeline_mode<synchronous>, transform_indices = @transform_3, window_bounds = array<i64: 4, 32, 8>}, {pipeline_mode = #tpu.pipeline_mode<synchronous>, transform_indices = @transform_4, window_bounds = array<i64: 4, 32, 8>}, {pipeline_mode = #tpu.pipeline_mode<synchronous>, transform_indices = @transform_5, window_bounds = array<i64: 4, 32, 8>}, {pipeline_mode = #tpu.pipeline_mode<synchronous>, transform_indices = @transform_6, window_bounds = array<i64: 4, 8, 32>}, {pipeline_mode = #tpu.pipeline_mode<synchronous>, transform_indices = @transform_7, window_bounds = array<i64: 1, 32>}, {pipeline_mode = #tpu.pipeline_mode<synchronous>, transform_indices = @transform_8, window_bounds = array<i64: 1, 32>}, {transform_indices = @transform_9, window_bounds = array<i64: 1, 8, 32>}, {transform_indices = @transform_10, window_bounds = array<i64: 4, 1, 8, 8>}]} {
    %c0 = arith.constant 0 : index
    %c0_0 = arith.constant 0 : index
    %c0_1 = arith.constant 0 : index
    %0 = vector.load %arg2[%c0, %c0_0, %c0_1] : memref<1x8x32xf32, #tpu.memory_space<vmem>>, vector<1x8x32xf32>
    %1 = vector.shape_cast %0 : vector<1x8x32xf32> to vector<8x32xf32>
    %c0_i32 = arith.constant 0 : i32
    %2 = arith.cmpi eq, %arg1, %c0_i32 : i32
    %3 = arith.extui %2 : i1 to i32
    %c0_i32_2 = arith.constant 0 : i32
    %4 = arith.cmpi ne, %3, %c0_i32_2 : i32
    scf.if %4 {
      %c0_62 = arith.constant 0 : index
      %c0_63 = arith.constant 0 : index
      %c0_64 = arith.constant 0 : index
      %86 = vector.load %arg3[%c0_62, %c0_63, %c0_64] : memref<1x8x32xf32, #tpu.memory_space<vmem>>, vector<1x8x32xf32>
      %87 = vector.shape_cast %86 : vector<1x8x32xf32> to vector<8x32xf32>
      %c0_65 = arith.constant 0 : index
      %c0_66 = arith.constant 0 : index
      %c0_67 = arith.constant 0 : index
      %88 = vector.load %arg4[%c0_65, %c0_66, %c0_67] : memref<1x8x32xf32, #tpu.memory_space<vmem>>, vector<1x8x32xf32>
      %89 = vector.shape_cast %88 : vector<1x8x32xf32> to vector<8x32xf32>
      %c0_68 = arith.constant 0 : index
      %c0_69 = arith.constant 0 : index
      %c0_70 = arith.constant 0 : index
      %90 = vector.load %arg6[%c0_68, %c0_69, %c0_70] : memref<4x32x8xf32, #tpu.memory_space<vmem>>, vector<1x32x8xf32>
      %91 = vector.shape_cast %90 : vector<1x32x8xf32> to vector<32x8xf32>
      %cst_71 = arith.constant dense<0.000000e+00> : vector<8x8xf32>
      %92 = tpu.matmul %87, %91, %cst_71 {dimension_numbers = #tpu.dot_dimension_numbers<[1], [0], [0], [1], [0, 0, 1, 1], [], []>} : vector<8x32xf32>, vector<32x8xf32>, vector<8x8xf32> -> vector<8x8xf32>
      %c0_72 = arith.constant 0 : index
      %c0_73 = arith.constant 0 : index
      %c0_74 = arith.constant 0 : index
      %93 = vector.load %arg14[%c0_72, %c0_73, %c0_74] : memref<4x8x8xf32, #tpu.memory_space<vmem>>, vector<1x8x8xf32>
      %94 = vector.shape_cast %93 : vector<1x8x8xf32> to vector<8x8xf32>
      %95 = vector.shape_cast %92 : vector<8x8xf32> to vector<1x8x8xf32>
      tpu.vector_store %arg14[%c0_72, %c0_73, %c0_74], %95 {strides = array<i32>} : memref<4x8x8xf32, #tpu.memory_space<vmem>>, vector<1x8x8xf32>,
      %c0_75 = arith.constant 0 : index
      %c0_76 = arith.constant 0 : index
      %c0_77 = arith.constant 0 : index
      %96 = vector.load %arg7[%c0_75, %c0_76, %c0_77] : memref<4x32x8xf32, #tpu.memory_space<vmem>>, vector<1x32x8xf32>
      %97 = vector.shape_cast %96 : vector<1x32x8xf32> to vector<32x8xf32>
      %cst_78 = arith.constant dense<0.000000e+00> : vector<8x8xf32>
      %98 = tpu.matmul %89, %97, %cst_78 {dimension_numbers = #tpu.dot_dimension_numbers<[1], [0], [0], [1], [0, 0, 1, 1], [], []>} : vector<8x32xf32>, vector<32x8xf32>, vector<8x8xf32> -> vector<8x8xf32>
      %c0_79 = arith.constant 0 : index
      %c0_80 = arith.constant 0 : index
      %c0_81 = arith.constant 0 : index
      %99 = vector.load %arg15[%c0_79, %c0_80, %c0_81] : memref<4x8x8xf32, #tpu.memory_space<vmem>>, vector<1x8x8xf32>
      %100 = vector.shape_cast %99 : vector<1x8x8xf32> to vector<8x8xf32>
      %101 = vector.shape_cast %98 : vector<8x8xf32> to vector<1x8x8xf32>
      tpu.vector_store %arg15[%c0_79, %c0_80, %c0_81], %101 {strides = array<i32>} : memref<4x8x8xf32, #tpu.memory_space<vmem>>, vector<1x8x8xf32>,
      %c1_82 = arith.constant 1 : index
      %c0_83 = arith.constant 0 : index
      %c0_84 = arith.constant 0 : index
      %102 = vector.load %arg6[%c1_82, %c0_83, %c0_84] : memref<4x32x8xf32, #tpu.memory_space<vmem>>, vector<1x32x8xf32>
      %103 = vector.shape_cast %102 : vector<1x32x8xf32> to vector<32x8xf32>
      %cst_85 = arith.constant dense<0.000000e+00> : vector<8x8xf32>
      %104 = tpu.matmul %87, %103, %cst_85 {dimension_numbers = #tpu.dot_dimension_numbers<[1], [0], [0], [1], [0, 0, 1, 1], [], []>} : vector<8x32xf32>, vector<32x8xf32>, vector<8x8xf32> -> vector<8x8xf32>
      %c1_86 = arith.constant 1 : index
      %c0_87 = arith.constant 0 : index
      %c0_88 = arith.constant 0 : index
      %105 = vector.load %arg14[%c1_86, %c0_87, %c0_88] : memref<4x8x8xf32, #tpu.memory_space<vmem>>, vector<1x8x8xf32>
      %106 = vector.shape_cast %105 : vector<1x8x8xf32> to vector<8x8xf32>
      %107 = vector.shape_cast %104 : vector<8x8xf32> to vector<1x8x8xf32>
      tpu.vector_store %arg14[%c1_86, %c0_87, %c0_88], %107 {strides = array<i32>} : memref<4x8x8xf32, #tpu.memory_space<vmem>>, vector<1x8x8xf32>,
      %c1_89 = arith.constant 1 : index
      %c0_90 = arith.constant 0 : index
      %c0_91 = arith.constant 0 : index
      %108 = vector.load %arg7[%c1_89, %c0_90, %c0_91] : memref<4x32x8xf32, #tpu.memory_space<vmem>>, vector<1x32x8xf32>
      %109 = vector.shape_cast %108 : vector<1x32x8xf32> to vector<32x8xf32>
      %cst_92 = arith.constant dense<0.000000e+00> : vector<8x8xf32>
      %110 = tpu.matmul %89, %109, %cst_92 {dimension_numbers = #tpu.dot_dimension_numbers<[1], [0], [0], [1], [0, 0, 1, 1], [], []>} : vector<8x32xf32>, vector<32x8xf32>, vector<8x8xf32> -> vector<8x8xf32>
      %c1_93 = arith.constant 1 : index
      %c0_94 = arith.constant 0 : index
      %c0_95 = arith.constant 0 : index
      %111 = vector.load %arg15[%c1_93, %c0_94, %c0_95] : memref<4x8x8xf32, #tpu.memory_space<vmem>>, vector<1x8x8xf32>
      %112 = vector.shape_cast %111 : vector<1x8x8xf32> to vector<8x8xf32>
      %113 = vector.shape_cast %110 : vector<8x8xf32> to vector<1x8x8xf32>
      tpu.vector_store %arg15[%c1_93, %c0_94, %c0_95], %113 {strides = array<i32>} : memref<4x8x8xf32, #tpu.memory_space<vmem>>, vector<1x8x8xf32>,
      %c2_96 = arith.constant 2 : index
      %c0_97 = arith.constant 0 : index
      %c0_98 = arith.constant 0 : index
      %114 = vector.load %arg6[%c2_96, %c0_97, %c0_98] : memref<4x32x8xf32, #tpu.memory_space<vmem>>, vector<1x32x8xf32>
      %115 = vector.shape_cast %114 : vector<1x32x8xf32> to vector<32x8xf32>
      %cst_99 = arith.constant dense<0.000000e+00> : vector<8x8xf32>
      %116 = tpu.matmul %87, %115, %cst_99 {dimension_numbers = #tpu.dot_dimension_numbers<[1], [0], [0], [1], [0, 0, 1, 1], [], []>} : vector<8x32xf32>, vector<32x8xf32>, vector<8x8xf32> -> vector<8x8xf32>
      %c2_100 = arith.constant 2 : index
      %c0_101 = arith.constant 0 : index
      %c0_102 = arith.constant 0 : index
      %117 = vector.load %arg14[%c2_100, %c0_101, %c0_102] : memref<4x8x8xf32, #tpu.memory_space<vmem>>, vector<1x8x8xf32>
      %118 = vector.shape_cast %117 : vector<1x8x8xf32> to vector<8x8xf32>
      %119 = vector.shape_cast %116 : vector<8x8xf32> to vector<1x8x8xf32>
      tpu.vector_store %arg14[%c2_100, %c0_101, %c0_102], %119 {strides = array<i32>} : memref<4x8x8xf32, #tpu.memory_space<vmem>>, vector<1x8x8xf32>,
      %c2_103 = arith.constant 2 : index
      %c0_104 = arith.constant 0 : index
      %c0_105 = arith.constant 0 : index
      %120 = vector.load %arg7[%c2_103, %c0_104, %c0_105] : memref<4x32x8xf32, #tpu.memory_space<vmem>>, vector<1x32x8xf32>
      %121 = vector.shape_cast %120 : vector<1x32x8xf32> to vector<32x8xf32>
      %cst_106 = arith.constant dense<0.000000e+00> : vector<8x8xf32>
      %122 = tpu.matmul %89, %121, %cst_106 {dimension_numbers = #tpu.dot_dimension_numbers<[1], [0], [0], [1], [0, 0, 1, 1], [], []>} : vector<8x32xf32>, vector<32x8xf32>, vector<8x8xf32> -> vector<8x8xf32>
      %c2_107 = arith.constant 2 : index
      %c0_108 = arith.constant 0 : index
      %c0_109 = arith.constant 0 : index
      %123 = vector.load %arg15[%c2_107, %c0_108, %c0_109] : memref<4x8x8xf32, #tpu.memory_space<vmem>>, vector<1x8x8xf32>
      %124 = vector.shape_cast %123 : vector<1x8x8xf32> to vector<8x8xf32>
      %125 = vector.shape_cast %122 : vector<8x8xf32> to vector<1x8x8xf32>
      tpu.vector_store %arg15[%c2_107, %c0_108, %c0_109], %125 {strides = array<i32>} : memref<4x8x8xf32, #tpu.memory_space<vmem>>, vector<1x8x8xf32>,
      %c3_110 = arith.constant 3 : index
      %c0_111 = arith.constant 0 : index
      %c0_112 = arith.constant 0 : index
      %126 = vector.load %arg6[%c3_110, %c0_111, %c0_112] : memref<4x32x8xf32, #tpu.memory_space<vmem>>, vector<1x32x8xf32>
      %127 = vector.shape_cast %126 : vector<1x32x8xf32> to vector<32x8xf32>
      %cst_113 = arith.constant dense<0.000000e+00> : vector<8x8xf32>
      %128 = tpu.matmul %87, %127, %cst_113 {dimension_numbers = #tpu.dot_dimension_numbers<[1], [0], [0], [1], [0, 0, 1, 1], [], []>} : vector<8x32xf32>, vector<32x8xf32>, vector<8x8xf32> -> vector<8x8xf32>
      %c3_114 = arith.constant 3 : index
      %c0_115 = arith.constant 0 : index
      %c0_116 = arith.constant 0 : index
      %129 = vector.load %arg14[%c3_114, %c0_115, %c0_116] : memref<4x8x8xf32, #tpu.memory_space<vmem>>, vector<1x8x8xf32>
      %130 = vector.shape_cast %129 : vector<1x8x8xf32> to vector<8x8xf32>
      %131 = vector.shape_cast %128 : vector<8x8xf32> to vector<1x8x8xf32>
      tpu.vector_store %arg14[%c3_114, %c0_115, %c0_116], %131 {strides = array<i32>} : memref<4x8x8xf32, #tpu.memory_space<vmem>>, vector<1x8x8xf32>,
      %c3_117 = arith.constant 3 : index
      %c0_118 = arith.constant 0 : index
      %c0_119 = arith.constant 0 : index
      %132 = vector.load %arg7[%c3_117, %c0_118, %c0_119] : memref<4x32x8xf32, #tpu.memory_space<vmem>>, vector<1x32x8xf32>
      %133 = vector.shape_cast %132 : vector<1x32x8xf32> to vector<32x8xf32>
      %cst_120 = arith.constant dense<0.000000e+00> : vector<8x8xf32>
      %134 = tpu.matmul %89, %133, %cst_120 {dimension_numbers = #tpu.dot_dimension_numbers<[1], [0], [0], [1], [0, 0, 1, 1], [], []>} : vector<8x32xf32>, vector<32x8xf32>, vector<8x8xf32> -> vector<8x8xf32>
      %c3_121 = arith.constant 3 : index
      %c0_122 = arith.constant 0 : index
      %c0_123 = arith.constant 0 : index
      %135 = vector.load %arg15[%c3_121, %c0_122, %c0_123] : memref<4x8x8xf32, #tpu.memory_space<vmem>>, vector<1x8x8xf32>
      %136 = vector.shape_cast %135 : vector<1x8x8xf32> to vector<8x8xf32>
      %137 = vector.shape_cast %134 : vector<8x8xf32> to vector<1x8x8xf32>
      tpu.vector_store %arg15[%c3_121, %c0_122, %c0_123], %137 {strides = array<i32>} : memref<4x8x8xf32, #tpu.memory_space<vmem>>, vector<1x8x8xf32>,
    } else {
    }
    %c0_3 = arith.constant 0 : index
    %c0_4 = arith.constant 0 : index
    %c0_5 = arith.constant 0 : index
    %5 = vector.load %arg5[%c0_3, %c0_4, %c0_5] : memref<4x32x8xf32, #tpu.memory_space<vmem>>, vector<1x32x8xf32>
    %6 = vector.shape_cast %5 : vector<1x32x8xf32> to vector<32x8xf32>
    %cst = arith.constant dense<0.000000e+00> : vector<8x8xf32>
    %7 = tpu.matmul %1, %6, %cst {dimension_numbers = #tpu.dot_dimension_numbers<[1], [0], [0], [1], [0, 0, 1, 1], [], []>} : vector<8x32xf32>, vector<32x8xf32>, vector<8x8xf32> -> vector<8x8xf32>
    %c0_6 = arith.constant 0 : index
    %c0_7 = arith.constant 0 : index
    %c0_8 = arith.constant 0 : index
    %8 = vector.load %arg13[%c0_6, %c0_7, %c0_8] : memref<4x8x8xf32, #tpu.memory_space<vmem>>, vector<1x8x8xf32>
    %9 = vector.shape_cast %8 : vector<1x8x8xf32> to vector<8x8xf32>
    %10 = vector.shape_cast %7 : vector<8x8xf32> to vector<1x8x8xf32>
    tpu.vector_store %arg13[%c0_6, %c0_7, %c0_8], %10 {strides = array<i32>} : memref<4x8x8xf32, #tpu.memory_space<vmem>>, vector<1x8x8xf32>,
    %c1 = arith.constant 1 : index
    %c0_9 = arith.constant 0 : index
    %c0_10 = arith.constant 0 : index
    %11 = vector.load %arg5[%c1, %c0_9, %c0_10] : memref<4x32x8xf32, #tpu.memory_space<vmem>>, vector<1x32x8xf32>
    %12 = vector.shape_cast %11 : vector<1x32x8xf32> to vector<32x8xf32>
    %cst_11 = arith.constant dense<0.000000e+00> : vector<8x8xf32>
    %13 = tpu.matmul %1, %12, %cst_11 {dimension_numbers = #tpu.dot_dimension_numbers<[1], [0], [0], [1], [0, 0, 1, 1], [], []>} : vector<8x32xf32>, vector<32x8xf32>, vector<8x8xf32> -> vector<8x8xf32>
    %c1_12 = arith.constant 1 : index
    %c0_13 = arith.constant 0 : index
    %c0_14 = arith.constant 0 : index
    %14 = vector.load %arg13[%c1_12, %c0_13, %c0_14] : memref<4x8x8xf32, #tpu.memory_space<vmem>>, vector<1x8x8xf32>
    %15 = vector.shape_cast %14 : vector<1x8x8xf32> to vector<8x8xf32>
    %16 = vector.shape_cast %13 : vector<8x8xf32> to vector<1x8x8xf32>
    tpu.vector_store %arg13[%c1_12, %c0_13, %c0_14], %16 {strides = array<i32>} : memref<4x8x8xf32, #tpu.memory_space<vmem>>, vector<1x8x8xf32>,
    %c2 = arith.constant 2 : index
    %c0_15 = arith.constant 0 : index
    %c0_16 = arith.constant 0 : index
    %17 = vector.load %arg5[%c2, %c0_15, %c0_16] : memref<4x32x8xf32, #tpu.memory_space<vmem>>, vector<1x32x8xf32>
    %18 = vector.shape_cast %17 : vector<1x32x8xf32> to vector<32x8xf32>
    %cst_17 = arith.constant dense<0.000000e+00> : vector<8x8xf32>
    %19 = tpu.matmul %1, %18, %cst_17 {dimension_numbers = #tpu.dot_dimension_numbers<[1], [0], [0], [1], [0, 0, 1, 1], [], []>} : vector<8x32xf32>, vector<32x8xf32>, vector<8x8xf32> -> vector<8x8xf32>
    %c2_18 = arith.constant 2 : index
    %c0_19 = arith.constant 0 : index
    %c0_20 = arith.constant 0 : index
    %20 = vector.load %arg13[%c2_18, %c0_19, %c0_20] : memref<4x8x8xf32, #tpu.memory_space<vmem>>, vector<1x8x8xf32>
    %21 = vector.shape_cast %20 : vector<1x8x8xf32> to vector<8x8xf32>
    %22 = vector.shape_cast %19 : vector<8x8xf32> to vector<1x8x8xf32>
    tpu.vector_store %arg13[%c2_18, %c0_19, %c0_20], %22 {strides = array<i32>} : memref<4x8x8xf32, #tpu.memory_space<vmem>>, vector<1x8x8xf32>,
    %c3 = arith.constant 3 : index
    %c0_21 = arith.constant 0 : index
    %c0_22 = arith.constant 0 : index
    %23 = vector.load %arg5[%c3, %c0_21, %c0_22] : memref<4x32x8xf32, #tpu.memory_space<vmem>>, vector<1x32x8xf32>
    %24 = vector.shape_cast %23 : vector<1x32x8xf32> to vector<32x8xf32>
    %cst_23 = arith.constant dense<0.000000e+00> : vector<8x8xf32>
    %25 = tpu.matmul %1, %24, %cst_23 {dimension_numbers = #tpu.dot_dimension_numbers<[1], [0], [0], [1], [0, 0, 1, 1], [], []>} : vector<8x32xf32>, vector<32x8xf32>, vector<8x8xf32> -> vector<8x8xf32>
    %c3_24 = arith.constant 3 : index
    %c0_25 = arith.constant 0 : index
    %c0_26 = arith.constant 0 : index
    %26 = vector.load %arg13[%c3_24, %c0_25, %c0_26] : memref<4x8x8xf32, #tpu.memory_space<vmem>>, vector<1x8x8xf32>
    %27 = vector.shape_cast %26 : vector<1x8x8xf32> to vector<8x8xf32>
    %28 = vector.shape_cast %25 : vector<8x8xf32> to vector<1x8x8xf32>
    tpu.vector_store %arg13[%c3_24, %c0_25, %c0_26], %28 {strides = array<i32>} : memref<4x8x8xf32, #tpu.memory_space<vmem>>, vector<1x8x8xf32>,
    %c0_27 = arith.constant 0 : index
    %c0_28 = arith.constant 0 : index
    %c0_29 = arith.constant 0 : index
    %29 = vector.load %arg13[%c0_27, %c0_28, %c0_29] : memref<4x8x8xf32, #tpu.memory_space<vmem>>, vector<4x8x8xf32>
    %c0_30 = arith.constant 0 : index
    %c0_31 = arith.constant 0 : index
    %c0_32 = arith.constant 0 : index
    %30 = vector.load %arg14[%c0_30, %c0_31, %c0_32] : memref<4x8x8xf32, #tpu.memory_space<vmem>>, vector<4x8x8xf32>
    "tpu.trace_start"() <{level = 10 : i32, message = "hqi,hki->hqk"}> : () -> ()
    %cst_33 = arith.constant dense<0.000000e+00> : vector<4x8x8xf32>
    %31 = tpu.matmul %29, %30, %cst_33 {dimension_numbers = #tpu.dot_dimension_numbers<[2], [2], [1], [1], [0, 0, 0, 1, 1, 1], [0], [0]>} : vector<4x8x8xf32>, vector<4x8x8xf32>, vector<4x8x8xf32> -> vector<4x8x8xf32>
    "tpu.trace_stop"() : () -> ()
    %cst_34 = arith.constant dense<0xFF800000> : vector<4x8xf32>
    %32 = vector.multi_reduction <maximumf>, %31, %cst_34 [2] : vector<4x8x8xf32> to vector<4x8xf32>
    %33 = vector.shape_cast %32 : vector<4x8xf32> to vector<4x8x1xf32>
    %34 = vector.broadcast %33 : vector<4x8x1xf32> to vector<4x8x8xf32>
    %35 = arith.subf %31, %34 : vector<4x8x8xf32>
    %36 = math.exp %35 : vector<4x8x8xf32>
    %cst_35 = arith.constant dense<0.000000e+00> : vector<4x8xf32>
    %37 = vector.multi_reduction <add>, %36, %cst_35 [2] : vector<4x8x8xf32> to vector<4x8xf32>
    %38 = vector.shape_cast %37 : vector<4x8xf32> to vector<4x8x1xf32>
    %39 = tpu.reciprocal %38 {approx = true} : vector<4x8x1xf32> -> vector<4x8x1xf32>
    %40 = arith.mulf %38, %39 : vector<4x8x1xf32>
    %cst_36 = arith.constant 2.000000e+00 : f32
    %41 = vector.broadcast %cst_36 : f32 to vector<4x8x1xf32>
    %42 = arith.subf %41, %40 : vector<4x8x1xf32>
    %43 = arith.mulf %39, %42 : vector<4x8x1xf32>
    %44 = vector.broadcast %43 : vector<4x8x1xf32> to vector<4x8x8xf32>
    %45 = arith.mulf %36, %44 : vector<4x8x8xf32>
    %c0_37 = arith.constant 0 : index
    %c0_38 = arith.constant 0 : index
    %c0_39 = arith.constant 0 : index
    %c0_40 = arith.constant 0 : index
    %46 = vector.load %arg12[%c0_37, %c0_38, %c0_39, %c0_40] : memref<4x1x8x8xf32, #tpu.memory_space<vmem>>, vector<4x1x8x8xf32>
    %47 = vector.shape_cast %46 : vector<4x1x8x8xf32> to vector<4x8x8xf32>
    %48 = vector.shape_cast %45 : vector<4x8x8xf32> to vector<4x1x8x8xf32>
    tpu.vector_store %arg12[%c0_37, %c0_38, %c0_39, %c0_40], %48 {strides = array<i32>} : memref<4x1x8x8xf32, #tpu.memory_space<vmem>>, vector<4x1x8x8xf32>,
    %c0_41 = arith.constant 0 : index
    %c0_42 = arith.constant 0 : index
    %c0_43 = arith.constant 0 : index
    %49 = vector.load %arg15[%c0_41, %c0_42, %c0_43] : memref<4x8x8xf32, #tpu.memory_space<vmem>>, vector<4x8x8xf32>
    "tpu.trace_start"() <{level = 10 : i32, message = "hqk,hkj->hqj"}> : () -> ()
    %cst_44 = arith.constant dense<0.000000e+00> : vector<4x8x8xf32>
    %50 = tpu.matmul %45, %49, %cst_44 {dimension_numbers = #tpu.dot_dimension_numbers<[2], [1], [1], [2], [0, 0, 0, 1, 1, 2], [0], [0]>} : vector<4x8x8xf32>, vector<4x8x8xf32>, vector<4x8x8xf32> -> vector<4x8x8xf32>
    "tpu.trace_stop"() : () -> ()
    %c0_45 = arith.constant 0 : index
    %c0_46 = arith.constant 0 : index
    %c0_47 = arith.constant 0 : index
    %51 = vector.load %arg8[%c0_45, %c0_46, %c0_47] : memref<4x8x32xf32, #tpu.memory_space<vmem>>, vector<4x8x32xf32>
    "tpu.trace_start"() <{level = 10 : i32, message = "hqj,hjm->hqm"}> : () -> ()
    %cst_48 = arith.constant dense<0.000000e+00> : vector<4x8x32xf32>
    %52 = tpu.matmul %50, %51, %cst_48 {dimension_numbers = #tpu.dot_dimension_numbers<[2], [1], [1], [2], [0, 0, 0, 1, 1, 2], [0], [0]>} : vector<4x8x8xf32>, vector<4x8x32xf32>, vector<4x8x32xf32> -> vector<4x8x32xf32>
    "tpu.trace_stop"() : () -> ()
    %cst_49 = arith.constant dense<0.000000e+00> : vector<8x32xf32>
    %53 = vector.multi_reduction <add>, %52, %cst_49 [0] : vector<4x8x32xf32> to vector<8x32xf32>
    %54 = arith.addf %53, %1 : vector<8x32xf32>
    %cst_50 = arith.constant dense<0.000000e+00> : vector<8xf32>
    %55 = vector.multi_reduction <add>, %54, %cst_50 [1] : vector<8x32xf32> to vector<8xf32>
    %56 = vector.shape_cast %55 : vector<8xf32> to vector<8x1xf32>
    %cst_51 = arith.constant 3.200000e+01 : f32
    %57 = vector.broadcast %cst_51 : f32 to vector<8x1xf32>
    %58 = arith.divf %56, %57 : vector<8x1xf32>
    %59 = vector.broadcast %58 : vector<8x1xf32> to vector<8x32xf32>
    %60 = arith.subf %54, %59 : vector<8x32xf32>
    %61 = arith.mulf %60, %60 : vector<8x32xf32>
    %cst_52 = arith.constant dense<0.000000e+00> : vector<8xf32>
    %62 = vector.multi_reduction <add>, %61, %cst_52 [1] : vector<8x32xf32> to vector<8xf32>
    %63 = vector.shape_cast %62 : vector<8xf32> to vector<8x1xf32>
    %cst_53 = arith.constant 3.200000e+01 : f32
    %64 = vector.broadcast %cst_53 : f32 to vector<8x1xf32>
    %65 = arith.divf %63, %64 : vector<8x1xf32>
    %66 = vector.broadcast %58 : vector<8x1xf32> to vector<8x32xf32>
    %67 = arith.subf %54, %66 : vector<8x32xf32>
    %cst_54 = arith.constant 9.99999974E-6 : f32
    %68 = vector.broadcast %cst_54 : f32 to vector<8x1xf32>
    %69 = arith.addf %65, %68 : vector<8x1xf32>
    %70 = math.rsqrt %69 : vector<8x1xf32>
    %71 = vector.broadcast %70 : vector<8x1xf32> to vector<8x32xf32>
    %72 = arith.mulf %67, %71 : vector<8x32xf32>
    %c0_55 = arith.constant 0 : index
    %c0_56 = arith.constant 0 : index
    %73 = vector.load %arg9[%c0_55, %c0_56] : memref<1x32xf32, #tpu.memory_space<vmem>>, vector<1x32xf32>
    %74 = vector.shape_cast %73 : vector<1x32xf32> to vector<32xf32>
    %75 = vector.shape_cast %74 : vector<32xf32> to vector<1x32xf32>
    %76 = vector.broadcast %75 : vector<1x32xf32> to vector<8x32xf32>
    %77 = arith.mulf %72, %76 : vector<8x32xf32>
    %c0_57 = arith.constant 0 : index
    %c0_58 = arith.constant 0 : index
    %78 = vector.load %arg10[%c0_57, %c0_58] : memref<1x32xf32, #tpu.memory_space<vmem>>, vector<1x32xf32>
    %79 = vector.shape_cast %78 : vector<1x32xf32> to vector<32xf32>
    %80 = vector.shape_cast %79 : vector<32xf32> to vector<1x32xf32>
    %81 = vector.broadcast %80 : vector<1x32xf32> to vector<8x32xf32>
    %82 = arith.addf %77, %81 : vector<8x32xf32>
    %c0_59 = arith.constant 0 : index
    %c0_60 = arith.constant 0 : index
    %c0_61 = arith.constant 0 : index
    %83 = vector.load %arg11[%c0_59, %c0_60, %c0_61] : memref<1x8x32xf32, #tpu.memory_space<vmem>>, vector<1x8x32xf32>
    %84 = vector.shape_cast %83 : vector<1x8x32xf32> to vector<8x32xf32>
    %85 = vector.shape_cast %82 : vector<8x32xf32> to vector<1x8x32xf32>
    tpu.vector_store %arg11[%c0_59, %c0_60, %c0_61], %85 {strides = array<i32>} : memref<1x8x32xf32, #tpu.memory_space<vmem>>, vector<1x8x32xf32>,
    return
  }
  func.func @transform_0(%arg0: i32, %arg1: i32) -> (i32, i32, i32) {
    %c0_i32 = arith.constant 0 : i32
    %c0_i32_0 = arith.constant 0 : i32
    return %arg0, %arg1, %c0_i32 : i32, i32, i32
  }
  func.func @transform_1(%arg0: i32, %arg1: i32) -> (i32, i32, i32) {
    %c0_i32 = arith.constant 0 : i32
    %c0_i32_0 = arith.constant 0 : i32
    %c0_i32_1 = arith.constant 0 : i32
    return %arg0, %c0_i32, %c0_i32_0 : i32, i32, i32
  }
  func.func @transform_2(%arg0: i32, %arg1: i32) -> (i32, i32, i32) {
    %c0_i32 = arith.constant 0 : i32
    %c0_i32_0 = arith.constant 0 : i32
    %c0_i32_1 = arith.constant 0 : i32
    return %arg0, %c0_i32, %c0_i32_0 : i32, i32, i32
  }
  func.func @transform_3(%arg0: i32, %arg1: i32) -> (i32, i32, i32) {
    %c0_i32 = arith.constant 0 : i32
    %c0_i32_0 = arith.constant 0 : i32
    %c0_i32_1 = arith.constant 0 : i32
    %c0_i32_2 = arith.constant 0 : i32
    return %c0_i32, %c0_i32_0, %c0_i32_1 : i32, i32, i32
  }
  func.func @transform_4(%arg0: i32, %arg1: i32) -> (i32, i32, i32) {
    %c0_i32 = arith.constant 0 : i32
    %c0_i32_0 = arith.constant 0 : i32
    %c0_i32_1 = arith.constant 0 : i32
    %c0_i32_2 = arith.constant 0 : i32
    return %c0_i32, %c0_i32_0, %c0_i32_1 : i32, i32, i32
  }
  func.func @transform_5(%arg0: i32, %arg1: i32) -> (i32, i32, i32) {
    %c0_i32 = arith.constant 0 : i32
    %c0_i32_0 = arith.constant 0 : i32
    %c0_i32_1 = arith.constant 0 : i32
    %c0_i32_2 = arith.constant 0 : i32
    return %c0_i32, %c0_i32_0, %c0_i32_1 : i32, i32, i32
  }
  func.func @transform_6(%arg0: i32, %arg1: i32) -> (i32, i32, i32) {
    %c0_i32 = arith.constant 0 : i32
    %c0_i32_0 = arith.constant 0 : i32
    %c0_i32_1 = arith.constant 0 : i32
    %c0_i32_2 = arith.constant 0 : i32
    return %c0_i32, %c0_i32_0, %c0_i32_1 : i32, i32, i32
  }
  func.func @transform_7(%arg0: i32, %arg1: i32) -> (i32, i32) {
    %c0_i32 = arith.constant 0 : i32
    %c0_i32_0 = arith.constant 0 : i32
    %c0_i32_1 = arith.constant 0 : i32
    return %c0_i32, %c0_i32_0 : i32, i32
  }
  func.func @transform_8(%arg0: i32, %arg1: i32) -> (i32, i32) {
    %c0_i32 = arith.constant 0 : i32
    %c0_i32_0 = arith.constant 0 : i32
    %c0_i32_1 = arith.constant 0 : i32
    return %c0_i32, %c0_i32_0 : i32, i32
  }
  func.func @transform_9(%arg0: i32, %arg1: i32) -> (i32, i32, i32) {
    %c0_i32 = arith.constant 0 : i32
    %c0_i32_0 = arith.constant 0 : i32
    return %arg0, %arg1, %c0_i32 : i32, i32, i32
  }
  func.func @transform_10(%arg0: i32, %arg1: i32) -> (i32, i32, i32, i32) {
    %c0_i32 = arith.constant 0 : i32
    %c0_i32_0 = arith.constant 0 : i32
    %c0_i32_1 = arith.constant 0 : i32
    return %c0_i32, %arg0, %arg1, %c0_i32_0 : i32, i32, i32, i32
  }
}

</mosaic_0001>

<llo_original>
// kernel: tpu_custom_call.1
$region0: #{tpu_custom_call.1}
  #allocation0 [shape = 'u32[]', space=smem, size = 0x4, offset = 0x4, fixed_abs, tag = 'smem constant byte address 0x4 - core index']
  #allocation1 [shape = 'u32[144,128]{1,0:T(1,128)}', space=vmem, size = 0x12000, scoped, tag = 'internal scratch']
  #allocation2 [shape = 'f32[4,8,8]{2,1,0:T(8,128)}', space=vmem, size = 0x4000, scoped, tag = 'scratch operand']
  #allocation3 [shape = 'f32[4,8,8]{2,1,0:T(8,128)}', space=vmem, size = 0x4000, scoped, tag = 'scratch operand']
  #allocation4 [shape = 'f32[4,8,8]{2,1,0:T(8,128)}', space=vmem, size = 0x4000, scoped, tag = 'scratch operand']
  %s0 = inlined_call_operand.vmem [shape: f32[2,8,32], index: 0, kind: input, shape index: {}]
  %s1 = inlined_call_operand.vmem [shape: f32[2,8,32], index: 1, kind: input, shape index: {}]
  %s2 = inlined_call_operand.vmem [shape: f32[2,8,32], index: 2, kind: input, shape index: {}]
  %s3 = inlined_call_operand.vmem [shape: f32[4,32,8], index: 3, kind: input, shape index: {}]
  %s4 = inlined_call_operand.vmem [shape: f32[4,32,8], index: 4, kind: input, shape index: {}]
  %s5 = inlined_call_operand.vmem [shape: f32[4,32,8], index: 5, kind: input, shape index: {}]
  %s6 = inlined_call_operand.vmem [shape: f32[4,8,32], index: 6, kind: input, shape index: {}]
  %s7 = inlined_call_operand.vmem [shape: f32[1,32], index: 7, kind: input, shape index: {}]
  %s8 = inlined_call_operand.vmem [shape: f32[1,32], index: 8, kind: input, shape index: {}]
  %s9 = inlined_call_operand.hbm [shape: f32[2,8,32], index: 9, kind: output, shape index: {0}]
  %s10 = inlined_call_operand.hbm [shape: f32[4,2,8,8], index: 10, kind: output, shape index: {1}]
  %11 = xla_tuple %s9, %s10
  %s12 = sld [smem:[#allocation0]]
  $region81: #{tpu_custom_call.1} parent=0
    _
  %s14 = ssub.s32 1, %s12
  %s15 = scalar_select 0, %s14, %s12
  $region1: #{tpu_custom_call.1} parent=0
    #allocation5 [shape = 'u8[8192]{0}', space=vmem, size = 0x2000, scoped, tag = 'output window, operand 0']
    #allocation6 [shape = 's32[2]{0}', space=sflag, size = 0x8, scoped, tag = 'scoped memory for tpu_custom_call.1']
    #allocation7 [shape = 'u8[32768]{0}', space=vmem, size = 0x8000, scoped, tag = 'output window, operand 1']
    #allocation8 [shape = 's32[2]{0}', space=sflag, size = 0x8, scoped, tag = 'scoped memory for tpu_custom_call.1']
    %16 = vsyncpa [#allocation6], 0
    %s17 = scalar_lea.sflag [#allocation6], 1
    %18 = vsyncpa %s17, 0
    %19 = vsyncpa [#allocation8], 0
    %s20 = scalar_lea.sflag [#allocation8], 1
    %21 = vsyncpa %s20, 0
    loop: start=0, step=1, limit=4
    $region2: #{tpu_custom_call.1} parent=1 // loop_pre_header
      _
    $region3: #{tpu_custom_call.1} parent=1 // loop_header
      %s23 = sphi 0, %s27
      %p24 = scmp.ge.s32.totalorder %s23, 4
      %s30 = sphi 0, %s42
      %s31 = sphi 0, %s38
      %s32 = sphi 0, %s30
      %s33 = sphi 0, %s31
      %s34 = sphi 0, %s32
      %s35 = sphi 0, %s33
      %s47 = sphi 0, %s49
      %s50 = sphi 0, %s47
      %s51 = sphi 0, %s50
      %s67 = sphi 0, %s51
      %s73 = sphi 0, %s75
      %s76 = sphi 0, %s73
      %s77 = sphi 0, %s76
      %s93 = sphi 0, %s77
      %s99 = sphi 0, %s101
      %s102 = sphi 0, %s99
      %s103 = sphi 0, %s102
      %s119 = sphi 0, %s103
      %s123 = sphi 0, %s123
      %s125 = sphi 0, %s123
      %s126 = sphi 0, %s125
      %s140 = sphi 0, %s126
      %s144 = sphi 0, %s144
      %s146 = sphi 0, %s144
      %s147 = sphi 0, %s146
      %s161 = sphi 0, %s147
      %s165 = sphi 0, %s165
      %s167 = sphi 0, %s165
      %s168 = sphi 0, %s167
      %s182 = sphi 0, %s168
      %s186 = sphi 0, %s186
      %s188 = sphi 0, %s186
      %s189 = sphi 0, %s188
      %s203 = sphi 0, %s189
      %s207 = sphi 0, %s207
      %s209 = sphi 0, %s207
      %s210 = sphi 0, %s209
      %s224 = sphi 0, %s210
      %s228 = sphi 0, %s228
      %s230 = sphi 0, %s228
      %s231 = sphi 0, %s230
      %s245 = sphi 0, %s231
      %s253 = sphi 0, %s255
      %s256 = sphi 0, %s253
      %s257 = sphi 0, %s256
      %s273 = sphi 0, %s257
      %s281 = sphi 0, %s283
      %s284 = sphi 0, %s281
      %s285 = sphi 0, %s284
      %s301 = sphi 0, %s285
    $region4: #{tpu_custom_call.1} parent=1 // loop_header_branch
      %26 = sbr.rel (%p24) target = $region8
    $region5: #{tpu_custom_call.1} parent=1 // loop_body
      %s28 = ssub.s32 %s23, 1
      %s29 = ssub.s32 %s23, 2
      %s36 = sadd.s32 1, %s31
      %p37 = scmp.ge.s32.totalorder %s36, 1
      %s38 = scalar_select %p37, 0, %s36
      %s39 = sadd.s32 1, %s30
      %s40 = scalar_select %p37, %s39, %s30
      %p41 = scmp.ge.s32.totalorder %s40, 2
      %s42 = scalar_select %p41, 0, %s40
      %s43 = ssub.s32 %s30, %s42
      %s44 = ssub.s32 %s31, %s38
      %s45 = sor.u32 %s43, %s44
      %p46 = scmp.eq.s32.totalorder %s45, 0
      %s48 = sadd.s32 %s47, 1
      %s49 = scalar_select %p46, %s47, %s48
      %p52 = pneg %p46
      %p53 = scmp.eq.s32.totalorder %s23, 1
      %p54 = por %p52, %p53
      %p55 = scmp.ne.s32.totalorder %s47, %s50
      %p56 = scmp.eq.s32.totalorder %s23, 0
      %p57 = por %p55, %p56
      %p58 = scmp.ne.s32.totalorder %s47, %s50
      %p59 = scmp.eq.s32.totalorder %s28, 1
      %p60 = por %p58, %p59
      %p61 = scmp.ne.s32.totalorder %s50, %s51
      %p62 = scmp.eq.s32.totalorder %s28, 0
      %p63 = por %p61, %p62
      %p64 = scmp.ne.s32.totalorder %s50, %s51
      %p65 = scmp.eq.s32.totalorder %s29, 1
      %p66 = por %p64, %p65
      %p68 = scmp.ne.s32.totalorder %s51, %s67
      %p69 = scmp.eq.s32.totalorder %s29, 0
      %p70 = por %p68, %p69
      %s71 = ssub.s32 %s30, %s42
      %p72 = scmp.eq.s32.totalorder %s71, 0
      %s74 = sadd.s32 %s73, 1
      %s75 = scalar_select %p72, %s73, %s74
      %p78 = pneg %p72
      %p79 = scmp.eq.s32.totalorder %s23, 1
      %p80 = por %p78, %p79
      %p81 = scmp.ne.s32.totalorder %s73, %s76
      %p82 = scmp.eq.s32.totalorder %s23, 0
      %p83 = por %p81, %p82
      %p84 = scmp.ne.s32.totalorder %s73, %s76
      %p85 = scmp.eq.s32.totalorder %s28, 1
      %p86 = por %p84, %p85
      %p87 = scmp.ne.s32.totalorder %s76, %s77
      %p88 = scmp.eq.s32.totalorder %s28, 0
      %p89 = por %p87, %p88
      %p90 = scmp.ne.s32.totalorder %s76, %s77
      %p91 = scmp.eq.s32.totalorder %s29, 1
      %p92 = por %p90, %p91
      %p94 = scmp.ne.s32.totalorder %s77, %s93
      %p95 = scmp.eq.s32.totalorder %s29, 0
      %p96 = por %p94, %p95
      %s97 = ssub.s32 %s30, %s42
      %p98 = scmp.eq.s32.totalorder %s97, 0
      %s100 = sadd.s32 %s99, 1
      %s101 = scalar_select %p98, %s99, %s100
      %p104 = pneg %p98
      %p105 = scmp.eq.s32.totalorder %s23, 1
      %p106 = por %p104, %p105
      %p107 = scmp.ne.s32.totalorder %s99, %s102
      %p108 = scmp.eq.s32.totalorder %s23, 0
      %p109 = por %p107, %p108
      %p110 = scmp.ne.s32.totalorder %s99, %s102
      %p111 = scmp.eq.s32.totalorder %s28, 1
      %p112 = por %p110, %p111
      %p113 = scmp.ne.s32.totalorder %s102, %s103
      %p114 = scmp.eq.s32.totalorder %s28, 0
      %p115 = por %p113, %p114
      %p116 = scmp.ne.s32.totalorder %s102, %s103
      %p117 = scmp.eq.s32.totalorder %s29, 1
      %p118 = por %p116, %p117
      %p120 = scmp.ne.s32.totalorder %s103, %s119
      %p121 = scmp.eq.s32.totalorder %s29, 0
      %p122 = por %p120, %p121
      %s124 = sadd.s32 %s123, 1
      %p127 = scmp.eq.s32.totalorder %s23, 1
      %p128 = scmp.ne.s32.totalorder %s123, %s125
      %p129 = scmp.eq.s32.totalorder %s23, 0
      %p130 = por %p128, %p129
      %p131 = scmp.ne.s32.totalorder %s123, %s125
      %p132 = scmp.eq.s32.totalorder %s28, 1
      %p133 = por %p131, %p132
      %p134 = scmp.ne.s32.totalorder %s125, %s126
      %p135 = scmp.eq.s32.totalorder %s28, 0
      %p136 = por %p134, %p135
      %p137 = scmp.ne.s32.totalorder %s125, %s126
      %p138 = scmp.eq.s32.totalorder %s29, 1
      %p139 = por %p137, %p138
      %p141 = scmp.ne.s32.totalorder %s126, %s140
      %p142 = scmp.eq.s32.totalorder %s29, 0
      %p143 = por %p141, %p142
      %s145 = sadd.s32 %s144, 1
      %p148 = scmp.eq.s32.totalorder %s23, 1
      %p149 = scmp.ne.s32.totalorder %s144, %s146
      %p150 = scmp.eq.s32.totalorder %s23, 0
      %p151 = por %p149, %p150
      %p152 = scmp.ne.s32.totalorder %s144, %s146
      %p153 = scmp.eq.s32.totalorder %s28, 1
      %p154 = por %p152, %p153
      %p155 = scmp.ne.s32.totalorder %s146, %s147
      %p156 = scmp.eq.s32.totalorder %s28, 0
      %p157 = por %p155, %p156
      %p158 = scmp.ne.s32.totalorder %s146, %s147
      %p159 = scmp.eq.s32.totalorder %s29, 1
      %p160 = por %p158, %p159
      %p162 = scmp.ne.s32.totalorder %s147, %s161
      %p163 = scmp.eq.s32.totalorder %s29, 0
      %p164 = por %p162, %p163
      %s166 = sadd.s32 %s165, 1
      %p169 = scmp.eq.s32.totalorder %s23, 1
      %p170 = scmp.ne.s32.totalorder %s165, %s167
      %p171 = scmp.eq.s32.totalorder %s23, 0
      %p172 = por %p170, %p171
      %p173 = scmp.ne.s32.totalorder %s165, %s167
      %p174 = scmp.eq.s32.totalorder %s28, 1
      %p175 = por %p173, %p174
      %p176 = scmp.ne.s32.totalorder %s167, %s168
      %p177 = scmp.eq.s32.totalorder %s28, 0
      %p178 = por %p176, %p177
      %p179 = scmp.ne.s32.totalorder %s167, %s168
      %p180 = scmp.eq.s32.totalorder %s29, 1
      %p181 = por %p179, %p180
      %p183 = scmp.ne.s32.totalorder %s168, %s182
      %p184 = scmp.eq.s32.totalorder %s29, 0
      %p185 = por %p183, %p184
      %s187 = sadd.s32 %s186, 1
      %p190 = scmp.eq.s32.totalorder %s23, 1
      %p191 = scmp.ne.s32.totalorder %s186, %s188
      %p192 = scmp.eq.s32.totalorder %s23, 0
      %p193 = por %p191, %p192
      %p194 = scmp.ne.s32.totalorder %s186, %s188
      %p195 = scmp.eq.s32.totalorder %s28, 1
      %p196 = por %p194, %p195
      %p197 = scmp.ne.s32.totalorder %s188, %s189
      %p198 = scmp.eq.s32.totalorder %s28, 0
      %p199 = por %p197, %p198
      %p200 = scmp.ne.s32.totalorder %s188, %s189
      %p201 = scmp.eq.s32.totalorder %s29, 1
      %p202 = por %p200, %p201
      %p204 = scmp.ne.s32.totalorder %s189, %s203
      %p205 = scmp.eq.s32.totalorder %s29, 0
      %p206 = por %p204, %p205
      %s208 = sadd.s32 %s207, 1
      %p211 = scmp.eq.s32.totalorder %s23, 1
      %p212 = scmp.ne.s32.totalorder %s207, %s209
      %p213 = scmp.eq.s32.totalorder %s23, 0
      %p214 = por %p212, %p213
      %p215 = scmp.ne.s32.totalorder %s207, %s209
      %p216 = scmp.eq.s32.totalorder %s28, 1
      %p217 = por %p215, %p216
      %p218 = scmp.ne.s32.totalorder %s209, %s210
      %p219 = scmp.eq.s32.totalorder %s28, 0
      %p220 = por %p218, %p219
      %p221 = scmp.ne.s32.totalorder %s209, %s210
      %p222 = scmp.eq.s32.totalorder %s29, 1
      %p223 = por %p221, %p222
      %p225 = scmp.ne.s32.totalorder %s210, %s224
      %p226 = scmp.eq.s32.totalorder %s29, 0
      %p227 = por %p225, %p226
      %s229 = sadd.s32 %s228, 1
      %p232 = scmp.eq.s32.totalorder %s23, 1
      %p233 = scmp.ne.s32.totalorder %s228, %s230
      %p234 = scmp.eq.s32.totalorder %s23, 0
      %p235 = por %p233, %p234
      %p236 = scmp.ne.s32.totalorder %s228, %s230
      %p237 = scmp.eq.s32.totalorder %s28, 1
      %p238 = por %p236, %p237
      %p239 = scmp.ne.s32.totalorder %s230, %s231
      %p240 = scmp.eq.s32.totalorder %s28, 0
      %p241 = por %p239, %p240
      %p242 = scmp.ne.s32.totalorder %s230, %s231
      %p243 = scmp.eq.s32.totalorder %s29, 1
      %p244 = por %p242, %p243
      %p246 = scmp.ne.s32.totalorder %s231, %s245
      %p247 = scmp.eq.s32.totalorder %s29, 0
      %p248 = por %p246, %p247
      %s249 = ssub.s32 %s30, %s42
      %s250 = ssub.s32 %s31, %s38
      %s251 = sor.u32 %s249, %s250
      %p252 = scmp.eq.s32.totalorder %s251, 0
      %s254 = sadd.s32 %s253, 1
      %s255 = scalar_select %p252, %s253, %s254
      %p258 = pneg %p252
      %p259 = scmp.eq.s32.totalorder %s23, 1
      %p260 = por %p258, %p259
      %p261 = scmp.ne.s32.totalorder %s253, %s256
      %p262 = scmp.eq.s32.totalorder %s23, 0
      %p263 = por %p261, %p262
      %p264 = scmp.ne.s32.totalorder %s253, %s256
      %p265 = scmp.eq.s32.totalorder %s28, 1
      %p266 = por %p264, %p265
      %p267 = scmp.ne.s32.totalorder %s256, %s257
      %p268 = scmp.eq.s32.totalorder %s28, 0
      %p269 = por %p267, %p268
      %p270 = scmp.ne.s32.totalorder %s256, %s257
      %p271 = scmp.eq.s32.totalorder %s29, 1
      %p272 = por %p270, %p271
      %p274 = scmp.ne.s32.totalorder %s257, %s273
      %p275 = scmp.eq.s32.totalorder %s29, 0
      %p276 = por %p274, %p275
      %s277 = ssub.s32 %s30, %s42
      %s278 = ssub.s32 %s31, %s38
      %s279 = sor.u32 %s277, %s278
      %p280 = scmp.eq.s32.totalorder %s279, 0
      %s282 = sadd.s32 %s281, 1
      %s283 = scalar_select %p280, %s281, %s282
      %p286 = pneg %p280
      %p287 = scmp.eq.s32.totalorder %s23, 1
      %p288 = por %p286, %p287
      %p289 = scmp.ne.s32.totalorder %s281, %s284
      %p290 = scmp.eq.s32.totalorder %s23, 0
      %p291 = por %p289, %p290
      %p292 = scmp.ne.s32.totalorder %s281, %s284
      %p293 = scmp.eq.s32.totalorder %s28, 1
      %p294 = por %p292, %p293
      %p295 = scmp.ne.s32.totalorder %s284, %s285
      %p296 = scmp.eq.s32.totalorder %s28, 0
      %p297 = por %p295, %p296
      %p298 = scmp.ne.s32.totalorder %s284, %s285
      %p299 = scmp.eq.s32.totalorder %s29, 1
      %p300 = por %p298, %p299
      %p302 = scmp.ne.s32.totalorder %s285, %s301
      %p303 = scmp.eq.s32.totalorder %s29, 0
      %p304 = por %p302, %p303
      %p305 = scmp.le.s32.totalorder 1, %s23
      %p306 = scmp.lt.s32.totalorder %s23, 3
      %p307 = pnand %p305, %p306
      %p308 = pneg %p307
      // Predicated region
      $region9: #{tpu_custom_call.1} parent=5 // pred_check
        _
      $region10: #{tpu_custom_call.1} parent=5 // pred_check_branch
        %310 = sbr.rel (%p307) target = $region12
      $region11: #{tpu_custom_call.1} parent=5 // pred_region
        %s311 = ssub.s32 %s23, 1
        // Predicated region
        $region13: #{tpu_custom_call.1} parent=11 // pred_check
          %p312 = pneg %p136
        $region14: #{tpu_custom_call.1} parent=11 // pred_check_branch
          %314 = sbr.rel (%p312) target = $region16
        $region15: #{tpu_custom_call.1} parent=11 // pred_region
          _
        $region16: #{tpu_custom_call.1} parent=11 // pred_fallthru
          _
        // Predicated region
        $region17: #{tpu_custom_call.1} parent=11 // pred_check
          %p315 = pneg %p157
        $region18: #{tpu_custom_call.1} parent=11 // pred_check_branch
          %317 = sbr.rel (%p315) target = $region20
        $region19: #{tpu_custom_call.1} parent=11 // pred_region
          _
        $region20: #{tpu_custom_call.1} parent=11 // pred_fallthru
          _
        // Predicated region
        $region21: #{tpu_custom_call.1} parent=11 // pred_check
          %p318 = pneg %p178
        $region22: #{tpu_custom_call.1} parent=11 // pred_check_branch
          %320 = sbr.rel (%p318) target = $region24
        $region23: #{tpu_custom_call.1} parent=11 // pred_region
          _
        $region24: #{tpu_custom_call.1} parent=11 // pred_fallthru
          _
        // Predicated region
        $region25: #{tpu_custom_call.1} parent=11 // pred_check
          %p321 = pneg %p199
        $region26: #{tpu_custom_call.1} parent=11 // pred_check_branch
          %323 = sbr.rel (%p321) target = $region28
        $region27: #{tpu_custom_call.1} parent=11 // pred_region
          _
        $region28: #{tpu_custom_call.1} parent=11 // pred_fallthru
          _
        // Predicated region
        $region29: #{tpu_custom_call.1} parent=11 // pred_check
          %p324 = pneg %p220
        $region30: #{tpu_custom_call.1} parent=11 // pred_check_branch
          %326 = sbr.rel (%p324) target = $region32
        $region31: #{tpu_custom_call.1} parent=11 // pred_region
          _
        $region32: #{tpu_custom_call.1} parent=11 // pred_fallthru
          _
        // Predicated region
        $region33: #{tpu_custom_call.1} parent=11 // pred_check
          %p327 = pneg %p241
        $region34: #{tpu_custom_call.1} parent=11 // pred_check_branch
          %329 = sbr.rel (%p327) target = $region36
        $region35: #{tpu_custom_call.1} parent=11 // pred_region
          _
        $region36: #{tpu_custom_call.1} parent=11 // pred_fallthru
          _
      $region12: #{tpu_custom_call.1} parent=5 // pred_fallthru
        _
      %p330 = scmp.lt.s32.totalorder %s23, 2
      // Predicated region
      $region37: #{tpu_custom_call.1} parent=5 // pred_check
        %p331 = pneg %p330
      $region38: #{tpu_custom_call.1} parent=5 // pred_check_branch
        %333 = sbr.rel (%p331) target = $region40
      $region39: #{tpu_custom_call.1} parent=5 // pred_region
        // Predicated region
        $region41: #{tpu_custom_call.1} parent=39 // pred_check
          %p334 = pneg %p57
        $region42: #{tpu_custom_call.1} parent=39 // pred_check_branch
          %336 = sbr.rel (%p334) target = $region44
        $region43: #{tpu_custom_call.1} parent=39 // pred_region
          %p337 = scmp.lt.s32.totalorder %s30, 1
          %s338 = scalar_select %p337, %s30, 1
          %p339 = scmp.lt.s32.totalorder %s31, 0
          %s340 = scalar_select %p339, %s31, 0
          %s341 = sadd.s32 %s340, %s338
          %s342 = smul.addr %s341, 8
          %s343 = scalar_lea.vmem %s0, %s342
        $region44: #{tpu_custom_call.1} parent=39 // pred_fallthru
          _
        // Predicated region
        $region45: #{tpu_custom_call.1} parent=39 // pred_check
          %p344 = pneg %p83
        $region46: #{tpu_custom_call.1} parent=39 // pred_check_branch
          %346 = sbr.rel (%p344) target = $region48
        $region47: #{tpu_custom_call.1} parent=39 // pred_region
          %p347 = scmp.lt.s32.totalorder %s30, 1
          %s348 = scalar_select %p347, %s30, 1
          %s349 = smul.addr %s348, 8
          %s350 = scalar_lea.vmem %s1, %s349
        $region48: #{tpu_custom_call.1} parent=39 // pred_fallthru
          _
        // Predicated region
        $region49: #{tpu_custom_call.1} parent=39 // pred_check
          %p351 = pneg %p109
        $region50: #{tpu_custom_call.1} parent=39 // pred_check_branch
          %353 = sbr.rel (%p351) target = $region52
        $region51: #{tpu_custom_call.1} parent=39 // pred_region
          %p354 = scmp.lt.s32.totalorder %s30, 1
          %s355 = scalar_select %p354, %s30, 1
          %s356 = smul.addr %s355, 8
          %s357 = scalar_lea.vmem %s2, %s356
        $region52: #{tpu_custom_call.1} parent=39 // pred_fallthru
          _
      $region40: #{tpu_custom_call.1} parent=5 // pred_fallthru
        _
      %p358 = scmp.le.s32.totalorder 1, %s23
      %p359 = scmp.lt.s32.totalorder %s23, 3
      %p360 = pnand %p358, %p359
      %p361 = pneg %p360
      // Predicated region
      $region53: #{tpu_custom_call.1} parent=5 // pred_check
        _
      $region54: #{tpu_custom_call.1} parent=5 // pred_check_branch
        %363 = sbr.rel (%p360) target = $region56
      $region55: #{tpu_custom_call.1} parent=5 // pred_region
        %s364 = ssub.s32 %s23, 1
        %p365 = scmp.lt.s32.totalorder %s32, 1
        %s366 = scalar_select %p365, %s32, 1
        %p367 = scmp.lt.s32.totalorder %s33, 0
        %s368 = scalar_select %p367, %s33, 0
        %s369 = sadd.s32 %s368, %s366
        %s370 = smul.addr %s369, 8
        %s371 = scalar_lea.vmem %s0, %s370
        %p372 = pneg %p63
        %p373 = pneg %p60
        %p374 = scmp.lt.s32.totalorder %s32, 1
        %s375 = scalar_select %p374, %s32, 1
        %s376 = smul.addr %s375, 8
        %s377 = scalar_lea.vmem %s1, %s376
        %p378 = pneg %p89
        %p379 = pneg %p86
        %p380 = scmp.lt.s32.totalorder %s32, 1
        %s381 = scalar_select %p380, %s32, 1
        %s382 = smul.addr %s381, 8
        %s383 = scalar_lea.vmem %s2, %s382
        %p384 = pneg %p115
        %p385 = pneg %p112
        %p386 = pneg %p136
        %p387 = pneg %p133
        %p388 = pneg %p157
        %p389 = pneg %p154
        %p390 = pneg %p178
        %p391 = pneg %p175
        %p392 = pneg %p199
        %p393 = pneg %p196
        %p394 = pneg %p220
        %p395 = pneg %p217
        %p396 = pneg %p241
        %p397 = pneg %p238
        %p398 = pneg %p269
        %p399 = pneg %p266
        %s400 = sand.u32 %s256, 1
        %s401 = scalar_lea.sflag [#allocation6], %s400
        %s402 = sand.u32 %s256, 1
        %s403 = smul.addr %s402, 8
        %s404 = scalar_lea.vmem [#allocation5], %s403
        %p405 = pneg %p297
        %p406 = pneg %p294
        %s407 = sand.u32 %s284, 1
        %s408 = scalar_lea.sflag [#allocation8], %s407
        %s409 = sand.u32 %s284, 1
        %s410 = smul.addr %s409, 32
        %s411 = scalar_lea.vmem [#allocation7], %s410
        %p412 = scmp.lt.s32.totalorder %s32, 1
        %s413 = scalar_select %p412, %s32, 1
        %p414 = scmp.lt.s32.totalorder %s33, 0
        %s415 = scalar_select %p414, %s33, 0
        %s416 = sadd.s32 %s415, %s413
        %s417 = smul.addr %s416, 8
        %s418 = scalar_lea.vmem %s0, %s417
        %p419 = scmp.lt.s32.totalorder %s32, 1
        %s420 = scalar_select %p419, %s32, 1
        %s421 = smul.addr %s420, 8
        %s422 = scalar_lea.vmem %s1, %s421
        %p423 = scmp.lt.s32.totalorder %s32, 1
        %s424 = scalar_select %p423, %s32, 1
        %s425 = smul.addr %s424, 8
        %s426 = scalar_lea.vmem %s2, %s425
        %v427 = vld [vmem:[%s418] sm:$0xff]
        %p428 = scmp.eq.s32.totalorder %s33, 0
        // Predicated region
        $region57: #{tpu_custom_call.1} parent=55 // pred_check
          %p429 = pneg %p428
        $region58: #{tpu_custom_call.1} parent=55 // pred_check_branch
          %431 = sbr.rel (%p429) target = $region60
        $region59: #{tpu_custom_call.1} parent=55 // pred_region
          %v432 = vld [vmem:[%s422] sm:$0xff]
          %v433 = vld [vmem:[%s426] sm:$0xff]
          %v434 = vld [vmem:[%s4] sm:$0xff]
          %v435 = vld [vmem:[%s4 + $0x8] sm:$0xff]
          %v436 = vld [vmem:[%s4 + $0x10] sm:$0xff]
          %v437 = vld [vmem:[%s4 + $0x18] sm:$0xff]
          %vm438 = vcmask 261120
          %v440 = vsel %vm438, %v432, 0
          %442 = vmatprep.subr.mxu0 0.0
          %443 = vmatpush1.msra.mxu0 %v434
          %444 = vmatprep.subr.mxu0 0.0
          %445 = vmatpush1.msra.mxu0 %v435
          %446 = vmatprep.subr.mxu0 0.0
          %447 = vmatpush1.msra.mxu0 %v436
          %448 = vmatprep.subr.mxu0 0.0
          %449 = vmatpush1.msra.mxu0 %v437
          %450 = vmatprep.subr.mxu0 0.0
          %451 = vmatpush1.msra.mxu0 0.0
          %452 = vmatprep.subr.mxu0 0.0
          %453 = vmatpush1.msra.mxu0 0.0
          %454 = vmatprep.subr.mxu0 0.0
          %455 = vmatpush1.msra.mxu0 0.0
          %456 = vmatprep.subr.mxu0 0.0
          %457 = vmatpush1.msra.mxu0 0.0
          %458 = vmatprep.subr.mxu0 0.0
          %459 = vmatpush1.msra.mxu0 0.0
          %460 = vmatprep.subr.mxu0 0.0
          %461 = vmatpush1.msra.mxu0 0.0
          %462 = vmatprep.subr.mxu0 0.0
          %463 = vmatpush1.msra.mxu0 0.0
          %464 = vmatprep.subr.mxu0 0.0
          %465 = vmatpush1.msra.mxu0 0.0
          %466 = vmatprep.subr.mxu0 0.0
          %467 = vmatpush1.msra.mxu0 0.0
          %468 = vmatprep.subr.mxu0 0.0
          %469 = vmatpush1.msra.mxu0 0.0
          %470 = vmatprep.subr.mxu0 0.0
          %471 = vmatpush1.msra.mxu0 0.0
          %472 = vmatprep.subr.mxu0 0.0
          %473 = vmatpush1.msra.mxu0 0.0
          %474 = vmatprep.subr.mxu0 0.0
          %475 = vmatpush1.msra.mxu0 0.0
          %476 = vmatprep.subr.mxu0 0.0
          %477 = vmatpush1.msra.mxu0 0.0
          %478 = vmatprep.subr.mxu0 0.0
          %479 = vmatpush1.msra.mxu0 0.0
          %480 = vmatprep.subr.mxu0 0.0
          %481 = vmatpush1.msra.mxu0 0.0
          %482 = vmatprep.subr.mxu0 0.0
          %483 = vmatpush1.msra.mxu0 0.0
          %484 = vmatprep.subr.mxu0 0.0
          %485 = vmatpush1.msra.mxu0 0.0
          %486 = vmatprep.subr.mxu0 0.0
          %487 = vmatpush1.msra.mxu0 0.0
          %488 = vmatprep.subr.mxu0 0.0
          %489 = vmatpush1.msra.mxu0 0.0
          %490 = vmatprep.subr.mxu0 0.0
          %491 = vmatpush1.msra.mxu0 0.0
          %492 = vmatprep.subr.mxu0 0.0
          %493 = vmatpush1.msra.mxu0 0.0
          %494 = vmatprep.subr.mxu0 0.0
          %495 = vmatpush1.msra.mxu0 0.0
          %496 = vmatprep.subr.mxu0 0.0
          %497 = vmatpush1.msra.mxu0 0.0
          %498 = vmatprep.subr.mxu0 0.0
          %499 = vmatpush1.msra.mxu0 0.0
          %500 = vmatprep.subr.mxu0 0.0
          %501 = vmatpush1.msra.mxu0 0.0
          %502 = vmatprep.subr.mxu0 0.0
          %503 = vmatpush1.msra.mxu0 0.0
          %504 = vmatprep.subr.mxu0 0.0
          %505 = vmatpush1.msra.mxu0 0.0
          %506 = vmatprep.mubr.f32.mxu0 0.0
          %507 = vmatmul.mubr.f32.gmra.mrb[0].mxu0 %v440
          %v508 = vpop.f32.mrb[0].mxu0
          %v509 = vadd.f32 0.0, %v508
          %v510 = vpop.f32.mrb[0].mxu0
          %511 = vdwg.mxu0
          %vm512 = vcmask 64512
          %513 = vst.msk [vmem:[#allocation3] sm:$0xff] %vm512, %v509
          %v514 = vld [vmem:[%s5] sm:$0xff]
          %v515 = vld [vmem:[%s5 + $0x8] sm:$0xff]
          %v516 = vld [vmem:[%s5 + $0x10] sm:$0xff]
          %v517 = vld [vmem:[%s5 + $0x18] sm:$0xff]
          %v519 = vsel %vm438, %v433, 0
          %521 = vmatprep.subr.mxu0 0.0
          %522 = vmatpush1.msra.mxu0 %v514
          %523 = vmatprep.subr.mxu0 0.0
          %524 = vmatpush1.msra.mxu0 %v515
          %525 = vmatprep.subr.mxu0 0.0
          %526 = vmatpush1.msra.mxu0 %v516
          %527 = vmatprep.subr.mxu0 0.0
          %528 = vmatpush1.msra.mxu0 %v517
          %529 = vmatprep.subr.mxu0 0.0
          %530 = vmatpush1.msra.mxu0 0.0
          %531 = vmatprep.subr.mxu0 0.0
          %532 = vmatpush1.msra.mxu0 0.0
          %533 = vmatprep.subr.mxu0 0.0
          %534 = vmatpush1.msra.mxu0 0.0
          %535 = vmatprep.subr.mxu0 0.0
          %536 = vmatpush1.msra.mxu0 0.0
          %537 = vmatprep.subr.mxu0 0.0
          %538 = vmatpush1.msra.mxu0 0.0
          %539 = vmatprep.subr.mxu0 0.0
          %540 = vmatpush1.msra.mxu0 0.0
          %541 = vmatprep.subr.mxu0 0.0
          %542 = vmatpush1.msra.mxu0 0.0
          %543 = vmatprep.subr.mxu0 0.0
          %544 = vmatpush1.msra.mxu0 0.0
          %545 = vmatprep.subr.mxu0 0.0
          %546 = vmatpush1.msra.mxu0 0.0
          %547 = vmatprep.subr.mxu0 0.0
          %548 = vmatpush1.msra.mxu0 0.0
          %549 = vmatprep.subr.mxu0 0.0
          %550 = vmatpush1.msra.mxu0 0.0
          %551 = vmatprep.subr.mxu0 0.0
          %552 = vmatpush1.msra.mxu0 0.0
          %553 = vmatprep.subr.mxu0 0.0
          %554 = vmatpush1.msra.mxu0 0.0
          %555 = vmatprep.subr.mxu0 0.0
          %556 = vmatpush1.msra.mxu0 0.0
          %557 = vmatprep.subr.mxu0 0.0
          %558 = vmatpush1.msra.mxu0 0.0
          %559 = vmatprep.subr.mxu0 0.0
          %560 = vmatpush1.msra.mxu0 0.0
          %561 = vmatprep.subr.mxu0 0.0
          %562 = vmatpush1.msra.mxu0 0.0
          %563 = vmatprep.subr.mxu0 0.0
          %564 = vmatpush1.msra.mxu0 0.0
          %565 = vmatprep.subr.mxu0 0.0
          %566 = vmatpush1.msra.mxu0 0.0
          %567 = vmatprep.subr.mxu0 0.0
          %568 = vmatpush1.msra.mxu0 0.0
          %569 = vmatprep.subr.mxu0 0.0
          %570 = vmatpush1.msra.mxu0 0.0
          %571 = vmatprep.subr.mxu0 0.0
          %572 = vmatpush1.msra.mxu0 0.0
          %573 = vmatprep.subr.mxu0 0.0
          %574 = vmatpush1.msra.mxu0 0.0
          %575 = vmatprep.subr.mxu0 0.0
          %576 = vmatpush1.msra.mxu0 0.0
          %577 = vmatprep.subr.mxu0 0.0
          %578 = vmatpush1.msra.mxu0 0.0
          %579 = vmatprep.subr.mxu0 0.0
          %580 = vmatpush1.msra.mxu0 0.0
          %581 = vmatprep.subr.mxu0 0.0
          %582 = vmatpush1.msra.mxu0 0.0
          %583 = vmatprep.subr.mxu0 0.0
          %584 = vmatpush1.msra.mxu0 0.0
          %585 = vmatprep.mubr.f32.mxu0 0.0
          %586 = vmatmul.mubr.f32.gmra.mrb[0].mxu0 %v519
          %v587 = vpop.f32.mrb[0].mxu0
          %v588 = vadd.f32 0.0, %v587
          %v589 = vpop.f32.mrb[0].mxu0
          %590 = vdwg.mxu0
          %591 = vst.msk [vmem:[#allocation4] sm:$0xff] %vm512, %v588
          %s592 = scalar_lea.vmem %s4, 32
          %v593 = vld [vmem:[%s592] sm:$0xff]
          %v594 = vld [vmem:[%s592 + $0x8] sm:$0xff]
          %v595 = vld [vmem:[%s592 + $0x10] sm:$0xff]
          %v596 = vld [vmem:[%s592 + $0x18] sm:$0xff]
          %597 = vmatprep.subr.mxu0 0.0
          %598 = vmatpush1.msra.mxu0 %v593
          %599 = vmatprep.subr.mxu0 0.0
          %600 = vmatpush1.msra.mxu0 %v594
          %601 = vmatprep.subr.mxu0 0.0
          %602 = vmatpush1.msra.mxu0 %v595
          %603 = vmatprep.subr.mxu0 0.0
          %604 = vmatpush1.msra.mxu0 %v596
          %605 = vmatprep.subr.mxu0 0.0
          %606 = vmatpush1.msra.mxu0 0.0
          %607 = vmatprep.subr.mxu0 0.0
          %608 = vmatpush1.msra.mxu0 0.0
          %609 = vmatprep.subr.mxu0 0.0
          %610 = vmatpush1.msra.mxu0 0.0
          %611 = vmatprep.subr.mxu0 0.0
          %612 = vmatpush1.msra.mxu0 0.0
          %613 = vmatprep.subr.mxu0 0.0
          %614 = vmatpush1.msra.mxu0 0.0
          %615 = vmatprep.subr.mxu0 0.0
          %616 = vmatpush1.msra.mxu0 0.0
          %617 = vmatprep.subr.mxu0 0.0
          %618 = vmatpush1.msra.mxu0 0.0
          %619 = vmatprep.subr.mxu0 0.0
          %620 = vmatpush1.msra.mxu0 0.0
          %621 = vmatprep.subr.mxu0 0.0
          %622 = vmatpush1.msra.mxu0 0.0
          %623 = vmatprep.subr.mxu0 0.0
          %624 = vmatpush1.msra.mxu0 0.0
          %625 = vmatprep.subr.mxu0 0.0
          %626 = vmatpush1.msra.mxu0 0.0
          %627 = vmatprep.subr.mxu0 0.0
          %628 = vmatpush1.msra.mxu0 0.0
          %629 = vmatprep.subr.mxu0 0.0
          %630 = vmatpush1.msra.mxu0 0.0
          %631 = vmatprep.subr.mxu0 0.0
          %632 = vmatpush1.msra.mxu0 0.0
          %633 = vmatprep.subr.mxu0 0.0
          %634 = vmatpush1.msra.mxu0 0.0
          %635 = vmatprep.subr.mxu0 0.0
          %636 = vmatpush1.msra.mxu0 0.0
          %637 = vmatprep.subr.mxu0 0.0
          %638 = vmatpush1.msra.mxu0 0.0
          %639 = vmatprep.subr.mxu0 0.0
          %640 = vmatpush1.msra.mxu0 0.0
          %641 = vmatprep.subr.mxu0 0.0
          %642 = vmatpush1.msra.mxu0 0.0
          %643 = vmatprep.subr.mxu0 0.0
          %644 = vmatpush1.msra.mxu0 0.0
          %645 = vmatprep.subr.mxu0 0.0
          %646 = vmatpush1.msra.mxu0 0.0
          %647 = vmatprep.subr.mxu0 0.0
          %648 = vmatpush1.msra.mxu0 0.0
          %649 = vmatprep.subr.mxu0 0.0
          %650 = vmatpush1.msra.mxu0 0.0
          %651 = vmatprep.subr.mxu0 0.0
          %652 = vmatpush1.msra.mxu0 0.0
          %653 = vmatprep.subr.mxu0 0.0
          %654 = vmatpush1.msra.mxu0 0.0
          %655 = vmatprep.subr.mxu0 0.0
          %656 = vmatpush1.msra.mxu0 0.0
          %657 = vmatprep.subr.mxu0 0.0
          %658 = vmatpush1.msra.mxu0 0.0
          %659 = vmatprep.subr.mxu0 0.0
          %660 = vmatpush1.msra.mxu0 0.0
          %661 = vmatprep.mubr.f32.mxu0 0.0
          %662 = vmatmul.mubr.f32.gmra.mrb[0].mxu0 %v440
          %v663 = vpop.f32.mrb[0].mxu0
          %v664 = vadd.f32 0.0, %v663
          %v665 = vpop.f32.mrb[0].mxu0
          %666 = vdwg.mxu0
          %s667 = scalar_lea.vmem [#allocation3], 8
          %668 = vst.msk [vmem:[%s667] sm:$0xff] %vm512, %v664
          %s669 = scalar_lea.vmem %s5, 32
          %v670 = vld [vmem:[%s669] sm:$0xff]
          %v671 = vld [vmem:[%s669 + $0x8] sm:$0xff]
          %v672 = vld [vmem:[%s669 + $0x10] sm:$0xff]
          %v673 = vld [vmem:[%s669 + $0x18] sm:$0xff]
          %674 = vmatprep.subr.mxu0 0.0
          %675 = vmatpush1.msra.mxu0 %v670
          %676 = vmatprep.subr.mxu0 0.0
          %677 = vmatpush1.msra.mxu0 %v671
          %678 = vmatprep.subr.mxu0 0.0
          %679 = vmatpush1.msra.mxu0 %v672
          %680 = vmatprep.subr.mxu0 0.0
          %681 = vmatpush1.msra.mxu0 %v673
          %682 = vmatprep.subr.mxu0 0.0
          %683 = vmatpush1.msra.mxu0 0.0
          %684 = vmatprep.subr.mxu0 0.0
          %685 = vmatpush1.msra.mxu0 0.0
          %686 = vmatprep.subr.mxu0 0.0
          %687 = vmatpush1.msra.mxu0 0.0
          %688 = vmatprep.subr.mxu0 0.0
          %689 = vmatpush1.msra.mxu0 0.0
          %690 = vmatprep.subr.mxu0 0.0
          %691 = vmatpush1.msra.mxu0 0.0
          %692 = vmatprep.subr.mxu0 0.0
          %693 = vmatpush1.msra.mxu0 0.0
          %694 = vmatprep.subr.mxu0 0.0
          %695 = vmatpush1.msra.mxu0 0.0
          %696 = vmatprep.subr.mxu0 0.0
          %697 = vmatpush1.msra.mxu0 0.0
          %698 = vmatprep.subr.mxu0 0.0
          %699 = vmatpush1.msra.mxu0 0.0
          %700 = vmatprep.subr.mxu0 0.0
          %701 = vmatpush1.msra.mxu0 0.0
          %702 = vmatprep.subr.mxu0 0.0
          %703 = vmatpush1.msra.mxu0 0.0
          %704 = vmatprep.subr.mxu0 0.0
          %705 = vmatpush1.msra.mxu0 0.0
          %706 = vmatprep.subr.mxu0 0.0
          %707 = vmatpush1.msra.mxu0 0.0
          %708 = vmatprep.subr.mxu0 0.0
          %709 = vmatpush1.msra.mxu0 0.0
          %710 = vmatprep.subr.mxu0 0.0
          %711 = vmatpush1.msra.mxu0 0.0
          %712 = vmatprep.subr.mxu0 0.0
          %713 = vmatpush1.msra.mxu0 0.0
          %714 = vmatprep.subr.mxu0 0.0
          %715 = vmatpush1.msra.mxu0 0.0
          %716 = vmatprep.subr.mxu0 0.0
          %717 = vmatpush1.msra.mxu0 0.0
          %718 = vmatprep.subr.mxu0 0.0
          %719 = vmatpush1.msra.mxu0 0.0
          %720 = vmatprep.subr.mxu0 0.0
          %721 = vmatpush1.msra.mxu0 0.0
          %722 = vmatprep.subr.mxu0 0.0
          %723 = vmatpush1.msra.mxu0 0.0
          %724 = vmatprep.subr.mxu0 0.0
          %725 = vmatpush1.msra.mxu0 0.0
          %726 = vmatprep.subr.mxu0 0.0
          %727 = vmatpush1.msra.mxu0 0.0
          %728 = vmatprep.subr.mxu0 0.0
          %729 = vmatpush1.msra.mxu0 0.0
          %730 = vmatprep.subr.mxu0 0.0
          %731 = vmatpush1.msra.mxu0 0.0
          %732 = vmatprep.subr.mxu0 0.0
          %733 = vmatpush1.msra.mxu0 0.0
          %734 = vmatprep.subr.mxu0 0.0
          %735 = vmatpush1.msra.mxu0 0.0
          %736 = vmatprep.subr.mxu0 0.0
          %737 = vmatpush1.msra.mxu0 0.0
          %738 = vmatprep.mubr.f32.mxu0 0.0
          %739 = vmatmul.mubr.f32.gmra.mrb[0].mxu0 %v519
          %v740 = vpop.f32.mrb[0].mxu0
          %v741 = vadd.f32 0.0, %v740
          %v742 = vpop.f32.mrb[0].mxu0
          %743 = vdwg.mxu0
          %s744 = scalar_lea.vmem [#allocation4], 8
          %745 = vst.msk [vmem:[%s744] sm:$0xff] %vm512, %v741
          %s746 = scalar_lea.vmem %s4, 64
          %v747 = vld [vmem:[%s746] sm:$0xff]
          %v748 = vld [vmem:[%s746 + $0x8] sm:$0xff]
          %v749 = vld [vmem:[%s746 + $0x10] sm:$0xff]
          %v750 = vld [vmem:[%s746 + $0x18] sm:$0xff]
          %751 = vmatprep.subr.mxu0 0.0
          %752 = vmatpush1.msra.mxu0 %v747
          %753 = vmatprep.subr.mxu0 0.0
          %754 = vmatpush1.msra.mxu0 %v748
          %755 = vmatprep.subr.mxu0 0.0
          %756 = vmatpush1.msra.mxu0 %v749
          %757 = vmatprep.subr.mxu0 0.0
          %758 = vmatpush1.msra.mxu0 %v750
          %759 = vmatprep.subr.mxu0 0.0
          %760 = vmatpush1.msra.mxu0 0.0
          %761 = vmatprep.subr.mxu0 0.0
          %762 = vmatpush1.msra.mxu0 0.0
          %763 = vmatprep.subr.mxu0 0.0
          %764 = vmatpush1.msra.mxu0 0.0
          %765 = vmatprep.subr.mxu0 0.0
          %766 = vmatpush1.msra.mxu0 0.0
          %767 = vmatprep.subr.mxu0 0.0
          %768 = vmatpush1.msra.mxu0 0.0
          %769 = vmatprep.subr.mxu0 0.0
          %770 = vmatpush1.msra.mxu0 0.0
          %771 = vmatprep.subr.mxu0 0.0
          %772 = vmatpush1.msra.mxu0 0.0
          %773 = vmatprep.subr.mxu0 0.0
          %774 = vmatpush1.msra.mxu0 0.0
          %775 = vmatprep.subr.mxu0 0.0
          %776 = vmatpush1.msra.mxu0 0.0
          %777 = vmatprep.subr.mxu0 0.0
          %778 = vmatpush1.msra.mxu0 0.0
          %779 = vmatprep.subr.mxu0 0.0
          %780 = vmatpush1.msra.mxu0 0.0
          %781 = vmatprep.subr.mxu0 0.0
          %782 = vmatpush1.msra.mxu0 0.0
          %783 = vmatprep.subr.mxu0 0.0
          %784 = vmatpush1.msra.mxu0 0.0
          %785 = vmatprep.subr.mxu0 0.0
          %786 = vmatpush1.msra.mxu0 0.0
          %787 = vmatprep.subr.mxu0 0.0
          %788 = vmatpush1.msra.mxu0 0.0
          %789 = vmatprep.subr.mxu0 0.0
          %790 = vmatpush1.msra.mxu0 0.0
          %791 = vmatprep.subr.mxu0 0.0
          %792 = vmatpush1.msra.mxu0 0.0
          %793 = vmatprep.subr.mxu0 0.0
          %794 = vmatpush1.msra.mxu0 0.0
          %795 = vmatprep.subr.mxu0 0.0
          %796 = vmatpush1.msra.mxu0 0.0
          %797 = vmatprep.subr.mxu0 0.0
          %798 = vmatpush1.msra.mxu0 0.0
          %799 = vmatprep.subr.mxu0 0.0
          %800 = vmatpush1.msra.mxu0 0.0
          %801 = vmatprep.subr.mxu0 0.0
          %802 = vmatpush1.msra.mxu0 0.0
          %803 = vmatprep.subr.mxu0 0.0
          %804 = vmatpush1.msra.mxu0 0.0
          %805 = vmatprep.subr.mxu0 0.0
          %806 = vmatpush1.msra.mxu0 0.0
          %807 = vmatprep.subr.mxu0 0.0
          %808 = vmatpush1.msra.mxu0 0.0
          %809 = vmatprep.subr.mxu0 0.0
          %810 = vmatpush1.msra.mxu0 0.0
          %811 = vmatprep.subr.mxu0 0.0
          %812 = vmatpush1.msra.mxu0 0.0
          %813 = vmatprep.subr.mxu0 0.0
          %814 = vmatpush1.msra.mxu0 0.0
          %815 = vmatprep.mubr.f32.mxu0 0.0
          %816 = vmatmul.mubr.f32.gmra.mrb[0].mxu0 %v440
          %v817 = vpop.f32.mrb[0].mxu0
          %v818 = vadd.f32 0.0, %v817
          %v819 = vpop.f32.mrb[0].mxu0
          %820 = vdwg.mxu0
          %s821 = scalar_lea.vmem [#allocation3], 16
          %822 = vst.msk [vmem:[%s821] sm:$0xff] %vm512, %v818
          %s823 = scalar_lea.vmem %s5, 64
          %v824 = vld [vmem:[%s823] sm:$0xff]
          %v825 = vld [vmem:[%s823 + $0x8] sm:$0xff]
          %v826 = vld [vmem:[%s823 + $0x10] sm:$0xff]
          %v827 = vld [vmem:[%s823 + $0x18] sm:$0xff]
          %828 = vmatprep.subr.mxu0 0.0
          %829 = vmatpush1.msra.mxu0 %v824
          %830 = vmatprep.subr.mxu0 0.0
          %831 = vmatpush1.msra.mxu0 %v825
          %832 = vmatprep.subr.mxu0 0.0
          %833 = vmatpush1.msra.mxu0 %v826
          %834 = vmatprep.subr.mxu0 0.0
          %835 = vmatpush1.msra.mxu0 %v827
          %836 = vmatprep.subr.mxu0 0.0
          %837 = vmatpush1.msra.mxu0 0.0
          %838 = vmatprep.subr.mxu0 0.0
          %839 = vmatpush1.msra.mxu0 0.0
          %840 = vmatprep.subr.mxu0 0.0
          %841 = vmatpush1.msra.mxu0 0.0
          %842 = vmatprep.subr.mxu0 0.0
          %843 = vmatpush1.msra.mxu0 0.0
          %844 = vmatprep.subr.mxu0 0.0
          %845 = vmatpush1.msra.mxu0 0.0
          %846 = vmatprep.subr.mxu0 0.0
          %847 = vmatpush1.msra.mxu0 0.0
          %848 = vmatprep.subr.mxu0 0.0
          %849 = vmatpush1.msra.mxu0 0.0
          %850 = vmatprep.subr.mxu0 0.0
          %851 = vmatpush1.msra.mxu0 0.0
          %852 = vmatprep.subr.mxu0 0.0
          %853 = vmatpush1.msra.mxu0 0.0
          %854 = vmatprep.subr.mxu0 0.0
          %855 = vmatpush1.msra.mxu0 0.0
          %856 = vmatprep.subr.mxu0 0.0
          %857 = vmatpush1.msra.mxu0 0.0
          %858 = vmatprep.subr.mxu0 0.0
          %859 = vmatpush1.msra.mxu0 0.0
          %860 = vmatprep.subr.mxu0 0.0
          %861 = vmatpush1.msra.mxu0 0.0
          %862 = vmatprep.subr.mxu0 0.0
          %863 = vmatpush1.msra.mxu0 0.0
          %864 = vmatprep.subr.mxu0 0.0
          %865 = vmatpush1.msra.mxu0 0.0
          %866 = vmatprep.subr.mxu0 0.0
          %867 = vmatpush1.msra.mxu0 0.0
          %868 = vmatprep.subr.mxu0 0.0
          %869 = vmatpush1.msra.mxu0 0.0
          %870 = vmatprep.subr.mxu0 0.0
          %871 = vmatpush1.msra.mxu0 0.0
          %872 = vmatprep.subr.mxu0 0.0
          %873 = vmatpush1.msra.mxu0 0.0
          %874 = vmatprep.subr.mxu0 0.0
          %875 = vmatpush1.msra.mxu0 0.0
          %876 = vmatprep.subr.mxu0 0.0
          %877 = vmatpush1.msra.mxu0 0.0
          %878 = vmatprep.subr.mxu0 0.0
          %879 = vmatpush1.msra.mxu0 0.0
          %880 = vmatprep.subr.mxu0 0.0
          %881 = vmatpush1.msra.mxu0 0.0
          %882 = vmatprep.subr.mxu0 0.0
          %883 = vmatpush1.msra.mxu0 0.0
          %884 = vmatprep.subr.mxu0 0.0
          %885 = vmatpush1.msra.mxu0 0.0
          %886 = vmatprep.subr.mxu0 0.0
          %887 = vmatpush1.msra.mxu0 0.0
          %888 = vmatprep.subr.mxu0 0.0
          %889 = vmatpush1.msra.mxu0 0.0
          %890 = vmatprep.subr.mxu0 0.0
          %891 = vmatpush1.msra.mxu0 0.0
          %892 = vmatprep.mubr.f32.mxu0 0.0
          %893 = vmatmul.mubr.f32.gmra.mrb[0].mxu0 %v519
          %v894 = vpop.f32.mrb[0].mxu0
          %v895 = vadd.f32 0.0, %v894
          %v896 = vpop.f32.mrb[0].mxu0
          %897 = vdwg.mxu0
          %s898 = scalar_lea.vmem [#allocation4], 16
          %899 = vst.msk [vmem:[%s898] sm:$0xff] %vm512, %v895
          %s900 = scalar_lea.vmem %s4, 96
          %v901 = vld [vmem:[%s900] sm:$0xff]
          %v902 = vld [vmem:[%s900 + $0x8] sm:$0xff]
          %v903 = vld [vmem:[%s900 + $0x10] sm:$0xff]
          %v904 = vld [vmem:[%s900 + $0x18] sm:$0xff]
          %905 = vmatprep.subr.mxu0 0.0
          %906 = vmatpush1.msra.mxu0 %v901
          %907 = vmatprep.subr.mxu0 0.0
          %908 = vmatpush1.msra.mxu0 %v902
          %909 = vmatprep.subr.mxu0 0.0
          %910 = vmatpush1.msra.mxu0 %v903
          %911 = vmatprep.subr.mxu0 0.0
          %912 = vmatpush1.msra.mxu0 %v904
          %913 = vmatprep.subr.mxu0 0.0
          %914 = vmatpush1.msra.mxu0 0.0
          %915 = vmatprep.subr.mxu0 0.0
          %916 = vmatpush1.msra.mxu0 0.0
          %917 = vmatprep.subr.mxu0 0.0
          %918 = vmatpush1.msra.mxu0 0.0
          %919 = vmatprep.subr.mxu0 0.0
          %920 = vmatpush1.msra.mxu0 0.0
          %921 = vmatprep.subr.mxu0 0.0
          %922 = vmatpush1.msra.mxu0 0.0
          %923 = vmatprep.subr.mxu0 0.0
          %924 = vmatpush1.msra.mxu0 0.0
          %925 = vmatprep.subr.mxu0 0.0
          %926 = vmatpush1.msra.mxu0 0.0
          %927 = vmatprep.subr.mxu0 0.0
          %928 = vmatpush1.msra.mxu0 0.0
          %929 = vmatprep.subr.mxu0 0.0
          %930 = vmatpush1.msra.mxu0 0.0
          %931 = vmatprep.subr.mxu0 0.0
          %932 = vmatpush1.msra.mxu0 0.0
          %933 = vmatprep.subr.mxu0 0.0
          %934 = vmatpush1.msra.mxu0 0.0
          %935 = vmatprep.subr.mxu0 0.0
          %936 = vmatpush1.msra.mxu0 0.0
          %937 = vmatprep.subr.mxu0 0.0
          %938 = vmatpush1.msra.mxu0 0.0
          %939 = vmatprep.subr.mxu0 0.0
          %940 = vmatpush1.msra.mxu0 0.0
          %941 = vmatprep.subr.mxu0 0.0
          %942 = vmatpush1.msra.mxu0 0.0
          %943 = vmatprep.subr.mxu0 0.0
          %944 = vmatpush1.msra.mxu0 0.0
          %945 = vmatprep.subr.mxu0 0.0
          %946 = vmatpush1.msra.mxu0 0.0
          %947 = vmatprep.subr.mxu0 0.0
          %948 = vmatpush1.msra.mxu0 0.0
          %949 = vmatprep.subr.mxu0 0.0
          %950 = vmatpush1.msra.mxu0 0.0
          %951 = vmatprep.subr.mxu0 0.0
          %952 = vmatpush1.msra.mxu0 0.0
          %953 = vmatprep.subr.mxu0 0.0
          %954 = vmatpush1.msra.mxu0 0.0
          %955 = vmatprep.subr.mxu0 0.0
          %956 = vmatpush1.msra.mxu0 0.0
          %957 = vmatprep.subr.mxu0 0.0
          %958 = vmatpush1.msra.mxu0 0.0
          %959 = vmatprep.subr.mxu0 0.0
          %960 = vmatpush1.msra.mxu0 0.0
          %961 = vmatprep.subr.mxu0 0.0
          %962 = vmatpush1.msra.mxu0 0.0
          %963 = vmatprep.subr.mxu0 0.0
          %964 = vmatpush1.msra.mxu0 0.0
          %965 = vmatprep.subr.mxu0 0.0
          %966 = vmatpush1.msra.mxu0 0.0
          %967 = vmatprep.subr.mxu0 0.0
          %968 = vmatpush1.msra.mxu0 0.0
          %969 = vmatprep.mubr.f32.mxu0 0.0
          %970 = vmatmul.mubr.f32.gmra.mrb[0].mxu0 %v440
          %v971 = vpop.f32.mrb[0].mxu0
          %v972 = vadd.f32 0.0, %v971
          %v973 = vpop.f32.mrb[0].mxu0
          %974 = vdwg.mxu0
          %s975 = scalar_lea.vmem [#allocation3], 24
          %976 = vst.msk [vmem:[%s975] sm:$0xff] %vm512, %v972
          %s977 = scalar_lea.vmem %s5, 96
          %v978 = vld [vmem:[%s977] sm:$0xff]
          %v979 = vld [vmem:[%s977 + $0x8] sm:$0xff]
          %v980 = vld [vmem:[%s977 + $0x10] sm:$0xff]
          %v981 = vld [vmem:[%s977 + $0x18] sm:$0xff]
          %982 = vmatprep.subr.mxu0 0.0
          %983 = vmatpush1.msra.mxu0 %v978
          %984 = vmatprep.subr.mxu0 0.0
          %985 = vmatpush1.msra.mxu0 %v979
          %986 = vmatprep.subr.mxu0 0.0
          %987 = vmatpush1.msra.mxu0 %v980
          %988 = vmatprep.subr.mxu0 0.0
          %989 = vmatpush1.msra.mxu0 %v981
          %990 = vmatprep.subr.mxu0 0.0
          %991 = vmatpush1.msra.mxu0 0.0
          %992 = vmatprep.subr.mxu0 0.0
          %993 = vmatpush1.msra.mxu0 0.0
          %994 = vmatprep.subr.mxu0 0.0
          %995 = vmatpush1.msra.mxu0 0.0
          %996 = vmatprep.subr.mxu0 0.0
          %997 = vmatpush1.msra.mxu0 0.0
          %998 = vmatprep.subr.mxu0 0.0
          %999 = vmatpush1.msra.mxu0 0.0
          %1000 = vmatprep.subr.mxu0 0.0
          %1001 = vmatpush1.msra.mxu0 0.0
          %1002 = vmatprep.subr.mxu0 0.0
          %1003 = vmatpush1.msra.mxu0 0.0
          %1004 = vmatprep.subr.mxu0 0.0
          %1005 = vmatpush1.msra.mxu0 0.0
          %1006 = vmatprep.subr.mxu0 0.0
          %1007 = vmatpush1.msra.mxu0 0.0
          %1008 = vmatprep.subr.mxu0 0.0
          %1009 = vmatpush1.msra.mxu0 0.0
          %1010 = vmatprep.subr.mxu0 0.0
          %1011 = vmatpush1.msra.mxu0 0.0
          %1012 = vmatprep.subr.mxu0 0.0
          %1013 = vmatpush1.msra.mxu0 0.0
          %1014 = vmatprep.subr.mxu0 0.0
          %1015 = vmatpush1.msra.mxu0 0.0
          %1016 = vmatprep.subr.mxu0 0.0
          %1017 = vmatpush1.msra.mxu0 0.0
          %1018 = vmatprep.subr.mxu0 0.0
          %1019 = vmatpush1.msra.mxu0 0.0
          %1020 = vmatprep.subr.mxu0 0.0
          %1021 = vmatpush1.msra.mxu0 0.0
          %1022 = vmatprep.subr.mxu0 0.0
          %1023 = vmatpush1.msra.mxu0 0.0
          %1024 = vmatprep.subr.mxu0 0.0
          %1025 = vmatpush1.msra.mxu0 0.0
          %1026 = vmatprep.subr.mxu0 0.0
          %1027 = vmatpush1.msra.mxu0 0.0
          %1028 = vmatprep.subr.mxu0 0.0
          %1029 = vmatpush1.msra.mxu0 0.0
          %1030 = vmatprep.subr.mxu0 0.0
          %1031 = vmatpush1.msra.mxu0 0.0
          %1032 = vmatprep.subr.mxu0 0.0
          %1033 = vmatpush1.msra.mxu0 0.0
          %1034 = vmatprep.subr.mxu0 0.0
          %1035 = vmatpush1.msra.mxu0 0.0
          %1036 = vmatprep.subr.mxu0 0.0
          %1037 = vmatpush1.msra.mxu0 0.0
          %1038 = vmatprep.subr.mxu0 0.0
          %1039 = vmatpush1.msra.mxu0 0.0
          %1040 = vmatprep.subr.mxu0 0.0
          %1041 = vmatpush1.msra.mxu0 0.0
          %1042 = vmatprep.subr.mxu0 0.0
          %1043 = vmatpush1.msra.mxu0 0.0
          %1044 = vmatprep.subr.mxu0 0.0
          %1045 = vmatpush1.msra.mxu0 0.0
          %1046 = vmatprep.mubr.f32.mxu0 0.0
          %1047 = vmatmul.mubr.f32.gmra.mrb[0].mxu0 %v519
          %v1048 = vpop.f32.mrb[0].mxu0
          %v1049 = vadd.f32 0.0, %v1048
          %v1050 = vpop.f32.mrb[0].mxu0
          %1051 = vdwg.mxu0
          %s1052 = scalar_lea.vmem [#allocation4], 24
          %1053 = vst.msk [vmem:[%s1052] sm:$0xff] %vm512, %v1049
        $region60: #{tpu_custom_call.1} parent=55 // pred_fallthru
          _
        %v1054 = vld [vmem:[%s3] sm:$0xff]
        %v1055 = vld [vmem:[%s3 + $0x8] sm:$0xff]
        %v1056 = vld [vmem:[%s3 + $0x10] sm:$0xff]
        %v1057 = vld [vmem:[%s3 + $0x18] sm:$0xff]
        %vm1058 = vcmask 261120
        %v1060 = vsel %vm1058, %v427, 0
        %1062 = vmatprep.subr.mxu0 0.0
        %1063 = vmatpush1.msra.mxu0 %v1054
        %1064 = vmatprep.subr.mxu0 0.0
        %1065 = vmatpush1.msra.mxu0 %v1055
        %1066 = vmatprep.subr.mxu0 0.0
        %1067 = vmatpush1.msra.mxu0 %v1056
        %1068 = vmatprep.subr.mxu0 0.0
        %1069 = vmatpush1.msra.mxu0 %v1057
        %1070 = vmatprep.subr.mxu0 0.0
        %1071 = vmatpush1.msra.mxu0 0.0
        %1072 = vmatprep.subr.mxu0 0.0
        %1073 = vmatpush1.msra.mxu0 0.0
        %1074 = vmatprep.subr.mxu0 0.0
        %1075 = vmatpush1.msra.mxu0 0.0
        %1076 = vmatprep.subr.mxu0 0.0
        %1077 = vmatpush1.msra.mxu0 0.0
        %1078 = vmatprep.subr.mxu0 0.0
        %1079 = vmatpush1.msra.mxu0 0.0
        %1080 = vmatprep.subr.mxu0 0.0
        %1081 = vmatpush1.msra.mxu0 0.0
        %1082 = vmatprep.subr.mxu0 0.0
        %1083 = vmatpush1.msra.mxu0 0.0
        %1084 = vmatprep.subr.mxu0 0.0
        %1085 = vmatpush1.msra.mxu0 0.0
        %1086 = vmatprep.subr.mxu0 0.0
        %1087 = vmatpush1.msra.mxu0 0.0
        %1088 = vmatprep.subr.mxu0 0.0
        %1089 = vmatpush1.msra.mxu0 0.0
        %1090 = vmatprep.subr.mxu0 0.0
        %1091 = vmatpush1.msra.mxu0 0.0
        %1092 = vmatprep.subr.mxu0 0.0
        %1093 = vmatpush1.msra.mxu0 0.0
        %1094 = vmatprep.subr.mxu0 0.0
        %1095 = vmatpush1.msra.mxu0 0.0
        %1096 = vmatprep.subr.mxu0 0.0
        %1097 = vmatpush1.msra.mxu0 0.0
        %1098 = vmatprep.subr.mxu0 0.0
        %1099 = vmatpush1.msra.mxu0 0.0
        %1100 = vmatprep.subr.mxu0 0.0
        %1101 = vmatpush1.msra.mxu0 0.0
        %1102 = vmatprep.subr.mxu0 0.0
        %1103 = vmatpush1.msra.mxu0 0.0
        %1104 = vmatprep.subr.mxu0 0.0
        %1105 = vmatpush1.msra.mxu0 0.0
        %1106 = vmatprep.subr.mxu0 0.0
        %1107 = vmatpush1.msra.mxu0 0.0
        %1108 = vmatprep.subr.mxu0 0.0
        %1109 = vmatpush1.msra.mxu0 0.0
        %1110 = vmatprep.subr.mxu0 0.0
        %1111 = vmatpush1.msra.mxu0 0.0
        %1112 = vmatprep.subr.mxu0 0.0
        %1113 = vmatpush1.msra.mxu0 0.0
        %1114 = vmatprep.subr.mxu0 0.0
        %1115 = vmatpush1.msra.mxu0 0.0
        %1116 = vmatprep.subr.mxu0 0.0
        %1117 = vmatpush1.msra.mxu0 0.0
        %1118 = vmatprep.subr.mxu0 0.0
        %1119 = vmatpush1.msra.mxu0 0.0
        %1120 = vmatprep.subr.mxu0 0.0
        %1121 = vmatpush1.msra.mxu0 0.0
        %1122 = vmatprep.subr.mxu0 0.0
        %1123 = vmatpush1.msra.mxu0 0.0
        %1124 = vmatprep.subr.mxu0 0.0
        %1125 = vmatpush1.msra.mxu0 0.0
        %1126 = vmatprep.mubr.f32.mxu0 0.0
        %1127 = vmatmul.mubr.f32.gmra.mrb[0].mxu0 %v1060
        %v1128 = vpop.f32.mrb[0].mxu0
        %v1129 = vadd.f32 0.0, %v1128
        %v1130 = vpop.f32.mrb[0].mxu0
        %1131 = vdwg.mxu0
        %vm1132 = vcmask 64512
        %1133 = vst.msk [vmem:[#allocation2] sm:$0xff] %vm1132, %v1129
        %s1134 = scalar_lea.vmem %s3, 32
        %v1135 = vld [vmem:[%s1134] sm:$0xff]
        %v1136 = vld [vmem:[%s1134 + $0x8] sm:$0xff]
        %v1137 = vld [vmem:[%s1134 + $0x10] sm:$0xff]
        %v1138 = vld [vmem:[%s1134 + $0x18] sm:$0xff]
        %1139 = vmatprep.subr.mxu0 0.0
        %1140 = vmatpush1.msra.mxu0 %v1135
        %1141 = vmatprep.subr.mxu0 0.0
        %1142 = vmatpush1.msra.mxu0 %v1136
        %1143 = vmatprep.subr.mxu0 0.0
        %1144 = vmatpush1.msra.mxu0 %v1137
        %1145 = vmatprep.subr.mxu0 0.0
        %1146 = vmatpush1.msra.mxu0 %v1138
        %1147 = vmatprep.subr.mxu0 0.0
        %1148 = vmatpush1.msra.mxu0 0.0
        %1149 = vmatprep.subr.mxu0 0.0
        %1150 = vmatpush1.msra.mxu0 0.0
        %1151 = vmatprep.subr.mxu0 0.0
        %1152 = vmatpush1.msra.mxu0 0.0
        %1153 = vmatprep.subr.mxu0 0.0
        %1154 = vmatpush1.msra.mxu0 0.0
        %1155 = vmatprep.subr.mxu0 0.0
        %1156 = vmatpush1.msra.mxu0 0.0
        %1157 = vmatprep.subr.mxu0 0.0
        %1158 = vmatpush1.msra.mxu0 0.0
        %1159 = vmatprep.subr.mxu0 0.0
        %1160 = vmatpush1.msra.mxu0 0.0
        %1161 = vmatprep.subr.mxu0 0.0
        %1162 = vmatpush1.msra.mxu0 0.0
        %1163 = vmatprep.subr.mxu0 0.0
        %1164 = vmatpush1.msra.mxu0 0.0
        %1165 = vmatprep.subr.mxu0 0.0
        %1166 = vmatpush1.msra.mxu0 0.0
        %1167 = vmatprep.subr.mxu0 0.0
        %1168 = vmatpush1.msra.mxu0 0.0
        %1169 = vmatprep.subr.mxu0 0.0
        %1170 = vmatpush1.msra.mxu0 0.0
        %1171 = vmatprep.subr.mxu0 0.0
        %1172 = vmatpush1.msra.mxu0 0.0
        %1173 = vmatprep.subr.mxu0 0.0
        %1174 = vmatpush1.msra.mxu0 0.0
        %1175 = vmatprep.subr.mxu0 0.0
        %1176 = vmatpush1.msra.mxu0 0.0
        %1177 = vmatprep.subr.mxu0 0.0
        %1178 = vmatpush1.msra.mxu0 0.0
        %1179 = vmatprep.subr.mxu0 0.0
        %1180 = vmatpush1.msra.mxu0 0.0
        %1181 = vmatprep.subr.mxu0 0.0
        %1182 = vmatpush1.msra.mxu0 0.0
        %1183 = vmatprep.subr.mxu0 0.0
        %1184 = vmatpush1.msra.mxu0 0.0
        %1185 = vmatprep.subr.mxu0 0.0
        %1186 = vmatpush1.msra.mxu0 0.0
        %1187 = vmatprep.subr.mxu0 0.0
        %1188 = vmatpush1.msra.mxu0 0.0
        %1189 = vmatprep.subr.mxu0 0.0
        %1190 = vmatpush1.msra.mxu0 0.0
        %1191 = vmatprep.subr.mxu0 0.0
        %1192 = vmatpush1.msra.mxu0 0.0
        %1193 = vmatprep.subr.mxu0 0.0
        %1194 = vmatpush1.msra.mxu0 0.0
        %1195 = vmatprep.subr.mxu0 0.0
        %1196 = vmatpush1.msra.mxu0 0.0
        %1197 = vmatprep.subr.mxu0 0.0
        %1198 = vmatpush1.msra.mxu0 0.0
        %1199 = vmatprep.subr.mxu0 0.0
        %1200 = vmatpush1.msra.mxu0 0.0
        %1201 = vmatprep.subr.mxu0 0.0
        %1202 = vmatpush1.msra.mxu0 0.0
        %1203 = vmatprep.mubr.f32.mxu0 0.0
        %1204 = vmatmul.mubr.f32.gmra.mrb[0].mxu0 %v1060
        %v1205 = vpop.f32.mrb[0].mxu0
        %v1206 = vadd.f32 0.0, %v1205
        %v1207 = vpop.f32.mrb[0].mxu0
        %1208 = vdwg.mxu0
        %s1209 = scalar_lea.vmem [#allocation2], 8
        %1210 = vst.msk [vmem:[%s1209] sm:$0xff] %vm1132, %v1206
        %s1211 = scalar_lea.vmem %s3, 64
        %v1212 = vld [vmem:[%s1211] sm:$0xff]
        %v1213 = vld [vmem:[%s1211 + $0x8] sm:$0xff]
        %v1214 = vld [vmem:[%s1211 + $0x10] sm:$0xff]
        %v1215 = vld [vmem:[%s1211 + $0x18] sm:$0xff]
        %1216 = vmatprep.subr.mxu0 0.0
        %1217 = vmatpush1.msra.mxu0 %v1212
        %1218 = vmatprep.subr.mxu0 0.0
        %1219 = vmatpush1.msra.mxu0 %v1213
        %1220 = vmatprep.subr.mxu0 0.0
        %1221 = vmatpush1.msra.mxu0 %v1214
        %1222 = vmatprep.subr.mxu0 0.0
        %1223 = vmatpush1.msra.mxu0 %v1215
        %1224 = vmatprep.subr.mxu0 0.0
        %1225 = vmatpush1.msra.mxu0 0.0
        %1226 = vmatprep.subr.mxu0 0.0
        %1227 = vmatpush1.msra.mxu0 0.0
        %1228 = vmatprep.subr.mxu0 0.0
        %1229 = vmatpush1.msra.mxu0 0.0
        %1230 = vmatprep.subr.mxu0 0.0
        %1231 = vmatpush1.msra.mxu0 0.0
        %1232 = vmatprep.subr.mxu0 0.0
        %1233 = vmatpush1.msra.mxu0 0.0
        %1234 = vmatprep.subr.mxu0 0.0
        %1235 = vmatpush1.msra.mxu0 0.0
        %1236 = vmatprep.subr.mxu0 0.0
        %1237 = vmatpush1.msra.mxu0 0.0
        %1238 = vmatprep.subr.mxu0 0.0
        %1239 = vmatpush1.msra.mxu0 0.0
        %1240 = vmatprep.subr.mxu0 0.0
        %1241 = vmatpush1.msra.mxu0 0.0
        %1242 = vmatprep.subr.mxu0 0.0
        %1243 = vmatpush1.msra.mxu0 0.0
        %1244 = vmatprep.subr.mxu0 0.0
        %1245 = vmatpush1.msra.mxu0 0.0
        %1246 = vmatprep.subr.mxu0 0.0
        %1247 = vmatpush1.msra.mxu0 0.0
        %1248 = vmatprep.subr.mxu0 0.0
        %1249 = vmatpush1.msra.mxu0 0.0
        %1250 = vmatprep.subr.mxu0 0.0
        %1251 = vmatpush1.msra.mxu0 0.0
        %1252 = vmatprep.subr.mxu0 0.0
        %1253 = vmatpush1.msra.mxu0 0.0
        %1254 = vmatprep.subr.mxu0 0.0
        %1255 = vmatpush1.msra.mxu0 0.0
        %1256 = vmatprep.subr.mxu0 0.0
        %1257 = vmatpush1.msra.mxu0 0.0
        %1258 = vmatprep.subr.mxu0 0.0
        %1259 = vmatpush1.msra.mxu0 0.0
        %1260 = vmatprep.subr.mxu0 0.0
        %1261 = vmatpush1.msra.mxu0 0.0
        %1262 = vmatprep.subr.mxu0 0.0
        %1263 = vmatpush1.msra.mxu0 0.0
        %1264 = vmatprep.subr.mxu0 0.0
        %1265 = vmatpush1.msra.mxu0 0.0
        %1266 = vmatprep.subr.mxu0 0.0
        %1267 = vmatpush1.msra.mxu0 0.0
        %1268 = vmatprep.subr.mxu0 0.0
        %1269 = vmatpush1.msra.mxu0 0.0
        %1270 = vmatprep.subr.mxu0 0.0
        %1271 = vmatpush1.msra.mxu0 0.0
        %1272 = vmatprep.subr.mxu0 0.0
        %1273 = vmatpush1.msra.mxu0 0.0
        %1274 = vmatprep.subr.mxu0 0.0
        %1275 = vmatpush1.msra.mxu0 0.0
        %1276 = vmatprep.subr.mxu0 0.0
        %1277 = vmatpush1.msra.mxu0 0.0
        %1278 = vmatprep.subr.mxu0 0.0
        %1279 = vmatpush1.msra.mxu0 0.0
        %1280 = vmatprep.mubr.f32.mxu0 0.0
        %1281 = vmatmul.mubr.f32.gmra.mrb[0].mxu0 %v1060
        %v1282 = vpop.f32.mrb[0].mxu0
        %v1283 = vadd.f32 0.0, %v1282
        %v1284 = vpop.f32.mrb[0].mxu0
        %1285 = vdwg.mxu0
        %s1286 = scalar_lea.vmem [#allocation2], 16
        %1287 = vst.msk [vmem:[%s1286] sm:$0xff] %vm1132, %v1283
        %s1288 = scalar_lea.vmem %s3, 96
        %v1289 = vld [vmem:[%s1288] sm:$0xff]
        %v1290 = vld [vmem:[%s1288 + $0x8] sm:$0xff]
        %v1291 = vld [vmem:[%s1288 + $0x10] sm:$0xff]
        %v1292 = vld [vmem:[%s1288 + $0x18] sm:$0xff]
        %1293 = vmatprep.subr.mxu0 0.0
        %1294 = vmatpush1.msra.mxu0 %v1289
        %1295 = vmatprep.subr.mxu0 0.0
        %1296 = vmatpush1.msra.mxu0 %v1290
        %1297 = vmatprep.subr.mxu0 0.0
        %1298 = vmatpush1.msra.mxu0 %v1291
        %1299 = vmatprep.subr.mxu0 0.0
        %1300 = vmatpush1.msra.mxu0 %v1292
        %1301 = vmatprep.subr.mxu0 0.0
        %1302 = vmatpush1.msra.mxu0 0.0
        %1303 = vmatprep.subr.mxu0 0.0
        %1304 = vmatpush1.msra.mxu0 0.0
        %1305 = vmatprep.subr.mxu0 0.0
        %1306 = vmatpush1.msra.mxu0 0.0
        %1307 = vmatprep.subr.mxu0 0.0
        %1308 = vmatpush1.msra.mxu0 0.0
        %1309 = vmatprep.subr.mxu0 0.0
        %1310 = vmatpush1.msra.mxu0 0.0
        %1311 = vmatprep.subr.mxu0 0.0
        %1312 = vmatpush1.msra.mxu0 0.0
        %1313 = vmatprep.subr.mxu0 0.0
        %1314 = vmatpush1.msra.mxu0 0.0
        %1315 = vmatprep.subr.mxu0 0.0
        %1316 = vmatpush1.msra.mxu0 0.0
        %1317 = vmatprep.subr.mxu0 0.0
        %1318 = vmatpush1.msra.mxu0 0.0
        %1319 = vmatprep.subr.mxu0 0.0
        %1320 = vmatpush1.msra.mxu0 0.0
        %1321 = vmatprep.subr.mxu0 0.0
        %1322 = vmatpush1.msra.mxu0 0.0
        %1323 = vmatprep.subr.mxu0 0.0
        %1324 = vmatpush1.msra.mxu0 0.0
        %1325 = vmatprep.subr.mxu0 0.0
        %1326 = vmatpush1.msra.mxu0 0.0
        %1327 = vmatprep.subr.mxu0 0.0
        %1328 = vmatpush1.msra.mxu0 0.0
        %1329 = vmatprep.subr.mxu0 0.0
        %1330 = vmatpush1.msra.mxu0 0.0
        %1331 = vmatprep.subr.mxu0 0.0
        %1332 = vmatpush1.msra.mxu0 0.0
        %1333 = vmatprep.subr.mxu0 0.0
        %1334 = vmatpush1.msra.mxu0 0.0
        %1335 = vmatprep.subr.mxu0 0.0
        %1336 = vmatpush1.msra.mxu0 0.0
        %1337 = vmatprep.subr.mxu0 0.0
        %1338 = vmatpush1.msra.mxu0 0.0
        %1339 = vmatprep.subr.mxu0 0.0
        %1340 = vmatpush1.msra.mxu0 0.0
        %1341 = vmatprep.subr.mxu0 0.0
        %1342 = vmatpush1.msra.mxu0 0.0
        %1343 = vmatprep.subr.mxu0 0.0
        %1344 = vmatpush1.msra.mxu0 0.0
        %1345 = vmatprep.subr.mxu0 0.0
        %1346 = vmatpush1.msra.mxu0 0.0
        %1347 = vmatprep.subr.mxu0 0.0
        %1348 = vmatpush1.msra.mxu0 0.0
        %1349 = vmatprep.subr.mxu0 0.0
        %1350 = vmatpush1.msra.mxu0 0.0
        %1351 = vmatprep.subr.mxu0 0.0
        %1352 = vmatpush1.msra.mxu0 0.0
        %1353 = vmatprep.subr.mxu0 0.0
        %1354 = vmatpush1.msra.mxu0 0.0
        %1355 = vmatprep.subr.mxu0 0.0
        %1356 = vmatpush1.msra.mxu0 0.0
        %1357 = vmatprep.mubr.f32.mxu0 0.0
        %1358 = vmatmul.mubr.f32.gmra.mrb[0].mxu0 %v1060
        %v1359 = vpop.f32.mrb[0].mxu0
        %v1360 = vadd.f32 0.0, %v1359
        %v1361 = vpop.f32.mrb[0].mxu0
        %1362 = vdwg.mxu0
        %s1363 = scalar_lea.vmem [#allocation2], 24
        %1364 = vst.msk [vmem:[%s1363] sm:$0xff] %vm1132, %v1360
        %v1365 = vld [vmem:[#allocation2] sm:$0xff]
        %v1366 = vld [vmem:[#allocation2 + $0x8] sm:$0xff]
        %v1367 = vld [vmem:[#allocation2 + $0x10] sm:$0xff]
        %v1368 = vld [vmem:[#allocation2 + $0x18] sm:$0xff]
        %v1369 = vld [vmem:[#allocation3] sm:$0xff]
        %v1370 = vld [vmem:[#allocation3 + $0x8] sm:$0xff]
        %v1371 = vld [vmem:[#allocation3 + $0x10] sm:$0xff]
        %v1372 = vld [vmem:[#allocation3 + $0x18] sm:$0xff]
        %v1374 = vsel %vm1132, %v1365, 0
        %v1377 = vsel %vm1132, %v1369, 0
        %1379 = vmatprep.subr.mxu0 0.0
        %1380 = vmatpush1.xpose.msra.mxu0 %v1377
        %1381 = vmatprep.subr.mxu0 0.0
        %1382 = vmatpush1.xpose.msra.mxu0 0.0
        %1383 = vmatprep.subr.mxu0 0.0
        %1384 = vmatpush1.xpose.msra.mxu0 0.0
        %1385 = vmatprep.subr.mxu0 0.0
        %1386 = vmatpush1.xpose.msra.mxu0 0.0
        %1387 = vmatprep.subr.mxu0 0.0
        %1388 = vmatpush1.xpose.msra.mxu0 0.0
        %1389 = vmatprep.subr.mxu0 0.0
        %1390 = vmatpush1.xpose.msra.mxu0 0.0
        %1391 = vmatprep.subr.mxu0 0.0
        %1392 = vmatpush1.xpose.msra.mxu0 0.0
        %1393 = vmatprep.subr.mxu0 0.0
        %1394 = vmatpush1.xpose.msra.mxu0 0.0
        %1395 = vmatprep.subr.mxu0 0.0
        %1396 = vmatpush1.xpose.msra.mxu0 0.0
        %1397 = vmatprep.subr.mxu0 0.0
        %1398 = vmatpush1.xpose.msra.mxu0 0.0
        %1399 = vmatprep.subr.mxu0 0.0
        %1400 = vmatpush1.xpose.msra.mxu0 0.0
        %1401 = vmatprep.subr.mxu0 0.0
        %1402 = vmatpush1.xpose.msra.mxu0 0.0
        %1403 = vmatprep.subr.mxu0 0.0
        %1404 = vmatpush1.xpose.msra.mxu0 0.0
        %1405 = vmatprep.subr.mxu0 0.0
        %1406 = vmatpush1.xpose.msra.mxu0 0.0
        %1407 = vmatprep.subr.mxu0 0.0
        %1408 = vmatpush1.xpose.msra.mxu0 0.0
        %1409 = vmatprep.subr.mxu0 0.0
        %1410 = vmatpush1.xpose.msra.mxu0 0.0
        %1411 = vmatprep.subr.mxu0 0.0
        %1412 = vmatpush1.xpose.msra.mxu0 0.0
        %1413 = vmatprep.subr.mxu0 0.0
        %1414 = vmatpush1.xpose.msra.mxu0 0.0
        %1415 = vmatprep.subr.mxu0 0.0
        %1416 = vmatpush1.xpose.msra.mxu0 0.0
        %1417 = vmatprep.subr.mxu0 0.0
        %1418 = vmatpush1.xpose.msra.mxu0 0.0
        %1419 = vmatprep.subr.mxu0 0.0
        %1420 = vmatpush1.xpose.msra.mxu0 0.0
        %1421 = vmatprep.subr.mxu0 0.0
        %1422 = vmatpush1.xpose.msra.mxu0 0.0
        %1423 = vmatprep.subr.mxu0 0.0
        %1424 = vmatpush1.xpose.msra.mxu0 0.0
        %1425 = vmatprep.subr.mxu0 0.0
        %1426 = vmatpush1.xpose.msra.mxu0 0.0
        %1427 = vmatprep.subr.mxu0 0.0
        %1428 = vmatpush1.xpose.msra.mxu0 0.0
        %1429 = vmatprep.subr.mxu0 0.0
        %1430 = vmatpush1.xpose.msra.mxu0 0.0
        %1431 = vmatprep.subr.mxu0 0.0
        %1432 = vmatpush1.xpose.msra.mxu0 0.0
        %1433 = vmatprep.subr.mxu0 0.0
        %1434 = vmatpush1.xpose.msra.mxu0 0.0
        %1435 = vmatprep.subr.mxu0 0.0
        %1436 = vmatpush1.xpose.msra.mxu0 0.0
        %1437 = vmatprep.subr.mxu0 0.0
        %1438 = vmatpush1.xpose.msra.mxu0 0.0
        %1439 = vmatprep.subr.mxu0 0.0
        %1440 = vmatpush1.xpose.msra.mxu0 0.0
        %1441 = vmatprep.subr.mxu0 0.0
        %1442 = vmatpush1.xpose.msra.mxu0 0.0
        %1443 = vmatprep.mubr.f32.mxu0 0.0
        %1444 = vmatmul.mubr.f32.gmra.mrb[0].mxu0 %v1374
        %v1445 = vpop.f32.mrb[0].mxu0
        %v1446 = vadd.f32 0.0, %v1445
        %v1447 = vpop.f32.mrb[0].mxu0
        %1448 = vdwg.mxu0
        %v1450 = vsel %vm1132, %v1366, 0
        %v1453 = vsel %vm1132, %v1370, 0
        %1455 = vmatprep.subr.mxu0 0.0
        %1456 = vmatpush1.xpose.msra.mxu0 %v1453
        %1457 = vmatprep.subr.mxu0 0.0
        %1458 = vmatpush1.xpose.msra.mxu0 0.0
        %1459 = vmatprep.subr.mxu0 0.0
        %1460 = vmatpush1.xpose.msra.mxu0 0.0
        %1461 = vmatprep.subr.mxu0 0.0
        %1462 = vmatpush1.xpose.msra.mxu0 0.0
        %1463 = vmatprep.subr.mxu0 0.0
        %1464 = vmatpush1.xpose.msra.mxu0 0.0
        %1465 = vmatprep.subr.mxu0 0.0
        %1466 = vmatpush1.xpose.msra.mxu0 0.0
        %1467 = vmatprep.subr.mxu0 0.0
        %1468 = vmatpush1.xpose.msra.mxu0 0.0
        %1469 = vmatprep.subr.mxu0 0.0
        %1470 = vmatpush1.xpose.msra.mxu0 0.0
        %1471 = vmatprep.subr.mxu0 0.0
        %1472 = vmatpush1.xpose.msra.mxu0 0.0
        %1473 = vmatprep.subr.mxu0 0.0
        %1474 = vmatpush1.xpose.msra.mxu0 0.0
        %1475 = vmatprep.subr.mxu0 0.0
        %1476 = vmatpush1.xpose.msra.mxu0 0.0
        %1477 = vmatprep.subr.mxu0 0.0
        %1478 = vmatpush1.xpose.msra.mxu0 0.0
        %1479 = vmatprep.subr.mxu0 0.0
        %1480 = vmatpush1.xpose.msra.mxu0 0.0
        %1481 = vmatprep.subr.mxu0 0.0
        %1482 = vmatpush1.xpose.msra.mxu0 0.0
        %1483 = vmatprep.subr.mxu0 0.0
        %1484 = vmatpush1.xpose.msra.mxu0 0.0
        %1485 = vmatprep.subr.mxu0 0.0
        %1486 = vmatpush1.xpose.msra.mxu0 0.0
        %1487 = vmatprep.subr.mxu0 0.0
        %1488 = vmatpush1.xpose.msra.mxu0 0.0
        %1489 = vmatprep.subr.mxu0 0.0
        %1490 = vmatpush1.xpose.msra.mxu0 0.0
        %1491 = vmatprep.subr.mxu0 0.0
        %1492 = vmatpush1.xpose.msra.mxu0 0.0
        %1493 = vmatprep.subr.mxu0 0.0
        %1494 = vmatpush1.xpose.msra.mxu0 0.0
        %1495 = vmatprep.subr.mxu0 0.0
        %1496 = vmatpush1.xpose.msra.mxu0 0.0
        %1497 = vmatprep.subr.mxu0 0.0
        %1498 = vmatpush1.xpose.msra.mxu0 0.0
        %1499 = vmatprep.subr.mxu0 0.0
        %1500 = vmatpush1.xpose.msra.mxu0 0.0
        %1501 = vmatprep.subr.mxu0 0.0
        %1502 = vmatpush1.xpose.msra.mxu0 0.0
        %1503 = vmatprep.subr.mxu0 0.0
        %1504 = vmatpush1.xpose.msra.mxu0 0.0
        %1505 = vmatprep.subr.mxu0 0.0
        %1506 = vmatpush1.xpose.msra.mxu0 0.0
        %1507 = vmatprep.subr.mxu0 0.0
        %1508 = vmatpush1.xpose.msra.mxu0 0.0
        %1509 = vmatprep.subr.mxu0 0.0
        %1510 = vmatpush1.xpose.msra.mxu0 0.0
        %1511 = vmatprep.subr.mxu0 0.0
        %1512 = vmatpush1.xpose.msra.mxu0 0.0
        %1513 = vmatprep.subr.mxu0 0.0
        %1514 = vmatpush1.xpose.msra.mxu0 0.0
        %1515 = vmatprep.subr.mxu0 0.0
        %1516 = vmatpush1.xpose.msra.mxu0 0.0
        %1517 = vmatprep.subr.mxu0 0.0
        %1518 = vmatpush1.xpose.msra.mxu0 0.0
        %1519 = vmatprep.mubr.f32.mxu0 0.0
        %1520 = vmatmul.mubr.f32.gmra.mrb[0].mxu0 %v1450
        %v1521 = vpop.f32.mrb[0].mxu0
        %v1522 = vadd.f32 0.0, %v1521
        %v1523 = vpop.f32.mrb[0].mxu0
        %1524 = vdwg.mxu0
        %v1526 = vsel %vm1132, %v1367, 0
        %v1529 = vsel %vm1132, %v1371, 0
        %1531 = vmatprep.subr.mxu0 0.0
        %1532 = vmatpush1.xpose.msra.mxu0 %v1529
        %1533 = vmatprep.subr.mxu0 0.0
        %1534 = vmatpush1.xpose.msra.mxu0 0.0
        %1535 = vmatprep.subr.mxu0 0.0
        %1536 = vmatpush1.xpose.msra.mxu0 0.0
        %1537 = vmatprep.subr.mxu0 0.0
        %1538 = vmatpush1.xpose.msra.mxu0 0.0
        %1539 = vmatprep.subr.mxu0 0.0
        %1540 = vmatpush1.xpose.msra.mxu0 0.0
        %1541 = vmatprep.subr.mxu0 0.0
        %1542 = vmatpush1.xpose.msra.mxu0 0.0
        %1543 = vmatprep.subr.mxu0 0.0
        %1544 = vmatpush1.xpose.msra.mxu0 0.0
        %1545 = vmatprep.subr.mxu0 0.0
        %1546 = vmatpush1.xpose.msra.mxu0 0.0
        %1547 = vmatprep.subr.mxu0 0.0
        %1548 = vmatpush1.xpose.msra.mxu0 0.0
        %1549 = vmatprep.subr.mxu0 0.0
        %1550 = vmatpush1.xpose.msra.mxu0 0.0
        %1551 = vmatprep.subr.mxu0 0.0
        %1552 = vmatpush1.xpose.msra.mxu0 0.0
        %1553 = vmatprep.subr.mxu0 0.0
        %1554 = vmatpush1.xpose.msra.mxu0 0.0
        %1555 = vmatprep.subr.mxu0 0.0
        %1556 = vmatpush1.xpose.msra.mxu0 0.0
        %1557 = vmatprep.subr.mxu0 0.0
        %1558 = vmatpush1.xpose.msra.mxu0 0.0
        %1559 = vmatprep.subr.mxu0 0.0
        %1560 = vmatpush1.xpose.msra.mxu0 0.0
        %1561 = vmatprep.subr.mxu0 0.0
        %1562 = vmatpush1.xpose.msra.mxu0 0.0
        %1563 = vmatprep.subr.mxu0 0.0
        %1564 = vmatpush1.xpose.msra.mxu0 0.0
        %1565 = vmatprep.subr.mxu0 0.0
        %1566 = vmatpush1.xpose.msra.mxu0 0.0
        %1567 = vmatprep.subr.mxu0 0.0
        %1568 = vmatpush1.xpose.msra.mxu0 0.0
        %1569 = vmatprep.subr.mxu0 0.0
        %1570 = vmatpush1.xpose.msra.mxu0 0.0
        %1571 = vmatprep.subr.mxu0 0.0
        %1572 = vmatpush1.xpose.msra.mxu0 0.0
        %1573 = vmatprep.subr.mxu0 0.0
        %1574 = vmatpush1.xpose.msra.mxu0 0.0
        %1575 = vmatprep.subr.mxu0 0.0
        %1576 = vmatpush1.xpose.msra.mxu0 0.0
        %1577 = vmatprep.subr.mxu0 0.0
        %1578 = vmatpush1.xpose.msra.mxu0 0.0
        %1579 = vmatprep.subr.mxu0 0.0
        %1580 = vmatpush1.xpose.msra.mxu0 0.0
        %1581 = vmatprep.subr.mxu0 0.0
        %1582 = vmatpush1.xpose.msra.mxu0 0.0
        %1583 = vmatprep.subr.mxu0 0.0
        %1584 = vmatpush1.xpose.msra.mxu0 0.0
        %1585 = vmatprep.subr.mxu0 0.0
        %1586 = vmatpush1.xpose.msra.mxu0 0.0
        %1587 = vmatprep.subr.mxu0 0.0
        %1588 = vmatpush1.xpose.msra.mxu0 0.0
        %1589 = vmatprep.subr.mxu0 0.0
        %1590 = vmatpush1.xpose.msra.mxu0 0.0
        %1591 = vmatprep.subr.mxu0 0.0
        %1592 = vmatpush1.xpose.msra.mxu0 0.0
        %1593 = vmatprep.subr.mxu0 0.0
        %1594 = vmatpush1.xpose.msra.mxu0 0.0
        %1595 = vmatprep.mubr.f32.mxu0 0.0
        %1596 = vmatmul.mubr.f32.gmra.mrb[0].mxu0 %v1526
        %v1597 = vpop.f32.mrb[0].mxu0
        %v1598 = vadd.f32 0.0, %v1597
        %v1599 = vpop.f32.mrb[0].mxu0
        %1600 = vdwg.mxu0
        %v1602 = vsel %vm1132, %v1368, 0
        %v1605 = vsel %vm1132, %v1372, 0
        %1607 = vmatprep.subr.mxu0 0.0
        %1608 = vmatpush1.xpose.msra.mxu0 %v1605
        %1609 = vmatprep.subr.mxu0 0.0
        %1610 = vmatpush1.xpose.msra.mxu0 0.0
        %1611 = vmatprep.subr.mxu0 0.0
        %1612 = vmatpush1.xpose.msra.mxu0 0.0
        %1613 = vmatprep.subr.mxu0 0.0
        %1614 = vmatpush1.xpose.msra.mxu0 0.0
        %1615 = vmatprep.subr.mxu0 0.0
        %1616 = vmatpush1.xpose.msra.mxu0 0.0
        %1617 = vmatprep.subr.mxu0 0.0
        %1618 = vmatpush1.xpose.msra.mxu0 0.0
        %1619 = vmatprep.subr.mxu0 0.0
        %1620 = vmatpush1.xpose.msra.mxu0 0.0
        %1621 = vmatprep.subr.mxu0 0.0
        %1622 = vmatpush1.xpose.msra.mxu0 0.0
        %1623 = vmatprep.subr.mxu0 0.0
        %1624 = vmatpush1.xpose.msra.mxu0 0.0
        %1625 = vmatprep.subr.mxu0 0.0
        %1626 = vmatpush1.xpose.msra.mxu0 0.0
        %1627 = vmatprep.subr.mxu0 0.0
        %1628 = vmatpush1.xpose.msra.mxu0 0.0
        %1629 = vmatprep.subr.mxu0 0.0
        %1630 = vmatpush1.xpose.msra.mxu0 0.0
        %1631 = vmatprep.subr.mxu0 0.0
        %1632 = vmatpush1.xpose.msra.mxu0 0.0
        %1633 = vmatprep.subr.mxu0 0.0
        %1634 = vmatpush1.xpose.msra.mxu0 0.0
        %1635 = vmatprep.subr.mxu0 0.0
        %1636 = vmatpush1.xpose.msra.mxu0 0.0
        %1637 = vmatprep.subr.mxu0 0.0
        %1638 = vmatpush1.xpose.msra.mxu0 0.0
        %1639 = vmatprep.subr.mxu0 0.0
        %1640 = vmatpush1.xpose.msra.mxu0 0.0
        %1641 = vmatprep.subr.mxu0 0.0
        %1642 = vmatpush1.xpose.msra.mxu0 0.0
        %1643 = vmatprep.subr.mxu0 0.0
        %1644 = vmatpush1.xpose.msra.mxu0 0.0
        %1645 = vmatprep.subr.mxu0 0.0
        %1646 = vmatpush1.xpose.msra.mxu0 0.0
        %1647 = vmatprep.subr.mxu0 0.0
        %1648 = vmatpush1.xpose.msra.mxu0 0.0
        %1649 = vmatprep.subr.mxu0 0.0
        %1650 = vmatpush1.xpose.msra.mxu0 0.0
        %1651 = vmatprep.subr.mxu0 0.0
        %1652 = vmatpush1.xpose.msra.mxu0 0.0
        %1653 = vmatprep.subr.mxu0 0.0
        %1654 = vmatpush1.xpose.msra.mxu0 0.0
        %1655 = vmatprep.subr.mxu0 0.0
        %1656 = vmatpush1.xpose.msra.mxu0 0.0
        %1657 = vmatprep.subr.mxu0 0.0
        %1658 = vmatpush1.xpose.msra.mxu0 0.0
        %1659 = vmatprep.subr.mxu0 0.0
        %1660 = vmatpush1.xpose.msra.mxu0 0.0
        %1661 = vmatprep.subr.mxu0 0.0
        %1662 = vmatpush1.xpose.msra.mxu0 0.0
        %1663 = vmatprep.subr.mxu0 0.0
        %1664 = vmatpush1.xpose.msra.mxu0 0.0
        %1665 = vmatprep.subr.mxu0 0.0
        %1666 = vmatpush1.xpose.msra.mxu0 0.0
        %1667 = vmatprep.subr.mxu0 0.0
        %1668 = vmatpush1.xpose.msra.mxu0 0.0
        %1669 = vmatprep.subr.mxu0 0.0
        %1670 = vmatpush1.xpose.msra.mxu0 0.0
        %1671 = vmatprep.mubr.f32.mxu0 0.0
        %1672 = vmatmul.mubr.f32.gmra.mrb[0].mxu0 %v1602
        %v1673 = vpop.f32.mrb[0].mxu0
        %v1674 = vadd.f32 0.0, %v1673
        %v1675 = vpop.f32.mrb[0].mxu0
        %1676 = vdwg.mxu0
        %v1677 = vsel %vm1132, %v1446, -inf
        %1678 = vmax.xlane.f32.xlu0 %v1677
        %v1679 = vpop.xlane.xlu0 %1678
        %v1680 = vsel %vm1132, %v1522, -inf
        %1681 = vmax.xlane.f32.xlu0 %v1680
        %v1682 = vpop.xlane.xlu0 %1681
        %v1683 = vsel %vm1132, %v1598, -inf
        %1684 = vmax.xlane.f32.xlu0 %v1683
        %v1685 = vpop.xlane.xlu0 %1684
        %v1686 = vsel %vm1132, %v1674, -inf
        %1687 = vmax.xlane.f32.xlu0 %v1686
        %v1688 = vpop.xlane.xlu0 %1687
        %v1689 = vsub.f32 %v1446, %v1679
        %v1690 = vsub.f32 %v1522, %v1682
        %v1691 = vsub.f32 %v1598, %v1685
        %v1692 = vsub.f32 %v1674, %v1688
        %v1693 = vmul.f32 %v1689, 1.442695
        %v1694 = vpow.pop %v1693
        %v1695 = vmul.f32 %v1690, 1.442695
        %v1696 = vpow.pop %v1695
        %v1697 = vmul.f32 %v1691, 1.442695
        %v1698 = vpow.pop %v1697
        %v1699 = vmul.f32 %v1692, 1.442695
        %v1700 = vpow.pop %v1699
        %v1701 = vsel %vm1132, %v1694, 0.0
        %1702 = vadd.xlane.f32.xlu0 %v1701
        %v1703 = vpop.xlane.xlu0 %1702
        %v1704 = vsel %vm1132, %v1696, 0.0
        %1705 = vadd.xlane.f32.xlu0 %v1704
        %v1706 = vpop.xlane.xlu0 %1705
        %v1707 = vsel %vm1132, %v1698, 0.0
        %1708 = vadd.xlane.f32.xlu0 %v1707
        %v1709 = vpop.xlane.xlu0 %1708
        %v1710 = vsel %vm1132, %v1700, 0.0
        %1711 = vadd.xlane.f32.xlu0 %v1710
        %v1712 = vpop.xlane.xlu0 %1711
        %v1713 = vrcp.pop %v1703
        %v1714 = vrcp.pop %v1706
        %v1715 = vrcp.pop %v1709
        %v1716 = vrcp.pop %v1712
        %v1717 = vmul.f32 %v1703, %v1713
        %v1718 = vmul.f32 %v1706, %v1714
        %v1719 = vmul.f32 %v1709, %v1715
        %v1720 = vmul.f32 %v1712, %v1716
        %v1721 = vsub.f32 2.0, %v1717
        %v1722 = vsub.f32 2.0, %v1718
        %v1723 = vsub.f32 2.0, %v1719
        %v1724 = vsub.f32 2.0, %v1720
        %v1725 = vmul.f32 %v1713, %v1721
        %v1726 = vmul.f32 %v1714, %v1722
        %v1727 = vmul.f32 %v1715, %v1723
        %v1728 = vmul.f32 %v1716, %v1724
        %v1729 = vmul.f32 %v1694, %v1725
        %v1730 = vmul.f32 %v1696, %v1726
        %v1731 = vmul.f32 %v1698, %v1727
        %v1732 = vmul.f32 %v1700, %v1728
        %1733 = vst.msk [vmem:[%s411] sm:$0xff] %vm1132, %v1729
        %1734 = vst.msk [vmem:[%s411 + $0x8] sm:$0xff] %vm1132, %v1730
        %1735 = vst.msk [vmem:[%s411 + $0x10] sm:$0xff] %vm1132, %v1731
        %1736 = vst.msk [vmem:[%s411 + $0x18] sm:$0xff] %vm1132, %v1732
        %v1737 = vld [vmem:[#allocation4] sm:$0xff]
        %v1738 = vld [vmem:[#allocation4 + $0x8] sm:$0xff]
        %v1739 = vld [vmem:[#allocation4 + $0x10] sm:$0xff]
        %v1740 = vld [vmem:[#allocation4 + $0x18] sm:$0xff]
        %v1742 = vsel %vm1132, %v1729, 0
        %1744 = vmatprep.subr.mxu0 0.0
        %1745 = vmatpush1.msra.mxu0 %v1737
        %1746 = vmatprep.subr.mxu0 0.0
        %1747 = vmatpush1.msra.mxu0 0.0
        %1748 = vmatprep.subr.mxu0 0.0
        %1749 = vmatpush1.msra.mxu0 0.0
        %1750 = vmatprep.subr.mxu0 0.0
        %1751 = vmatpush1.msra.mxu0 0.0
        %1752 = vmatprep.subr.mxu0 0.0
        %1753 = vmatpush1.msra.mxu0 0.0
        %1754 = vmatprep.subr.mxu0 0.0
        %1755 = vmatpush1.msra.mxu0 0.0
        %1756 = vmatprep.subr.mxu0 0.0
        %1757 = vmatpush1.msra.mxu0 0.0
        %1758 = vmatprep.subr.mxu0 0.0
        %1759 = vmatpush1.msra.mxu0 0.0
        %1760 = vmatprep.subr.mxu0 0.0
        %1761 = vmatpush1.msra.mxu0 0.0
        %1762 = vmatprep.subr.mxu0 0.0
        %1763 = vmatpush1.msra.mxu0 0.0
        %1764 = vmatprep.subr.mxu0 0.0
        %1765 = vmatpush1.msra.mxu0 0.0
        %1766 = vmatprep.subr.mxu0 0.0
        %1767 = vmatpush1.msra.mxu0 0.0
        %1768 = vmatprep.subr.mxu0 0.0
        %1769 = vmatpush1.msra.mxu0 0.0
        %1770 = vmatprep.subr.mxu0 0.0
        %1771 = vmatpush1.msra.mxu0 0.0
        %1772 = vmatprep.subr.mxu0 0.0
        %1773 = vmatpush1.msra.mxu0 0.0
        %1774 = vmatprep.subr.mxu0 0.0
        %1775 = vmatpush1.msra.mxu0 0.0
        %1776 = vmatprep.subr.mxu0 0.0
        %1777 = vmatpush1.msra.mxu0 0.0
        %1778 = vmatprep.subr.mxu0 0.0
        %1779 = vmatpush1.msra.mxu0 0.0
        %1780 = vmatprep.subr.mxu0 0.0
        %1781 = vmatpush1.msra.mxu0 0.0
        %1782 = vmatprep.subr.mxu0 0.0
        %1783 = vmatpush1.msra.mxu0 0.0
        %1784 = vmatprep.subr.mxu0 0.0
        %1785 = vmatpush1.msra.mxu0 0.0
        %1786 = vmatprep.subr.mxu0 0.0
        %1787 = vmatpush1.msra.mxu0 0.0
        %1788 = vmatprep.subr.mxu0 0.0
        %1789 = vmatpush1.msra.mxu0 0.0
        %1790 = vmatprep.subr.mxu0 0.0
        %1791 = vmatpush1.msra.mxu0 0.0
        %1792 = vmatprep.subr.mxu0 0.0
        %1793 = vmatpush1.msra.mxu0 0.0
        %1794 = vmatprep.subr.mxu0 0.0
        %1795 = vmatpush1.msra.mxu0 0.0
        %1796 = vmatprep.subr.mxu0 0.0
        %1797 = vmatpush1.msra.mxu0 0.0
        %1798 = vmatprep.subr.mxu0 0.0
        %1799 = vmatpush1.msra.mxu0 0.0
        %1800 = vmatprep.subr.mxu0 0.0
        %1801 = vmatpush1.msra.mxu0 0.0
        %1802 = vmatprep.subr.mxu0 0.0
        %1803 = vmatpush1.msra.mxu0 0.0
        %1804 = vmatprep.subr.mxu0 0.0
        %1805 = vmatpush1.msra.mxu0 0.0
        %1806 = vmatprep.subr.mxu0 0.0
        %1807 = vmatpush1.msra.mxu0 0.0
        %1808 = vmatprep.mubr.f32.mxu0 0.0
        %1809 = vmatmul.mubr.f32.gmra.mrb[0].mxu0 %v1742
        %v1810 = vpop.f32.mrb[0].mxu0
        %v1811 = vadd.f32 0.0, %v1810
        %v1812 = vpop.f32.mrb[0].mxu0
        %1813 = vdwg.mxu0
        %v1815 = vsel %vm1132, %v1730, 0
        %1817 = vmatprep.subr.mxu0 0.0
        %1818 = vmatpush1.msra.mxu0 %v1738
        %1819 = vmatprep.subr.mxu0 0.0
        %1820 = vmatpush1.msra.mxu0 0.0
        %1821 = vmatprep.subr.mxu0 0.0
        %1822 = vmatpush1.msra.mxu0 0.0
        %1823 = vmatprep.subr.mxu0 0.0
        %1824 = vmatpush1.msra.mxu0 0.0
        %1825 = vmatprep.subr.mxu0 0.0
        %1826 = vmatpush1.msra.mxu0 0.0
        %1827 = vmatprep.subr.mxu0 0.0
        %1828 = vmatpush1.msra.mxu0 0.0
        %1829 = vmatprep.subr.mxu0 0.0
        %1830 = vmatpush1.msra.mxu0 0.0
        %1831 = vmatprep.subr.mxu0 0.0
        %1832 = vmatpush1.msra.mxu0 0.0
        %1833 = vmatprep.subr.mxu0 0.0
        %1834 = vmatpush1.msra.mxu0 0.0
        %1835 = vmatprep.subr.mxu0 0.0
        %1836 = vmatpush1.msra.mxu0 0.0
        %1837 = vmatprep.subr.mxu0 0.0
        %1838 = vmatpush1.msra.mxu0 0.0
        %1839 = vmatprep.subr.mxu0 0.0
        %1840 = vmatpush1.msra.mxu0 0.0
        %1841 = vmatprep.subr.mxu0 0.0
        %1842 = vmatpush1.msra.mxu0 0.0
        %1843 = vmatprep.subr.mxu0 0.0
        %1844 = vmatpush1.msra.mxu0 0.0
        %1845 = vmatprep.subr.mxu0 0.0
        %1846 = vmatpush1.msra.mxu0 0.0
        %1847 = vmatprep.subr.mxu0 0.0
        %1848 = vmatpush1.msra.mxu0 0.0
        %1849 = vmatprep.subr.mxu0 0.0
        %1850 = vmatpush1.msra.mxu0 0.0
        %1851 = vmatprep.subr.mxu0 0.0
        %1852 = vmatpush1.msra.mxu0 0.0
        %1853 = vmatprep.subr.mxu0 0.0
        %1854 = vmatpush1.msra.mxu0 0.0
        %1855 = vmatprep.subr.mxu0 0.0
        %1856 = vmatpush1.msra.mxu0 0.0
        %1857 = vmatprep.subr.mxu0 0.0
        %1858 = vmatpush1.msra.mxu0 0.0
        %1859 = vmatprep.subr.mxu0 0.0
        %1860 = vmatpush1.msra.mxu0 0.0
        %1861 = vmatprep.subr.mxu0 0.0
        %1862 = vmatpush1.msra.mxu0 0.0
        %1863 = vmatprep.subr.mxu0 0.0
        %1864 = vmatpush1.msra.mxu0 0.0
        %1865 = vmatprep.subr.mxu0 0.0
        %1866 = vmatpush1.msra.mxu0 0.0
        %1867 = vmatprep.subr.mxu0 0.0
        %1868 = vmatpush1.msra.mxu0 0.0
        %1869 = vmatprep.subr.mxu0 0.0
        %1870 = vmatpush1.msra.mxu0 0.0
        %1871 = vmatprep.subr.mxu0 0.0
        %1872 = vmatpush1.msra.mxu0 0.0
        %1873 = vmatprep.subr.mxu0 0.0
        %1874 = vmatpush1.msra.mxu0 0.0
        %1875 = vmatprep.subr.mxu0 0.0
        %1876 = vmatpush1.msra.mxu0 0.0
        %1877 = vmatprep.subr.mxu0 0.0
        %1878 = vmatpush1.msra.mxu0 0.0
        %1879 = vmatprep.subr.mxu0 0.0
        %1880 = vmatpush1.msra.mxu0 0.0
        %1881 = vmatprep.mubr.f32.mxu0 0.0
        %1882 = vmatmul.mubr.f32.gmra.mrb[0].mxu0 %v1815
        %v1883 = vpop.f32.mrb[0].mxu0
        %v1884 = vadd.f32 0.0, %v1883
        %v1885 = vpop.f32.mrb[0].mxu0
        %1886 = vdwg.mxu0
        %v1888 = vsel %vm1132, %v1731, 0
        %1890 = vmatprep.subr.mxu0 0.0
        %1891 = vmatpush1.msra.mxu0 %v1739
        %1892 = vmatprep.subr.mxu0 0.0
        %1893 = vmatpush1.msra.mxu0 0.0
        %1894 = vmatprep.subr.mxu0 0.0
        %1895 = vmatpush1.msra.mxu0 0.0
        %1896 = vmatprep.subr.mxu0 0.0
        %1897 = vmatpush1.msra.mxu0 0.0
        %1898 = vmatprep.subr.mxu0 0.0
        %1899 = vmatpush1.msra.mxu0 0.0
        %1900 = vmatprep.subr.mxu0 0.0
        %1901 = vmatpush1.msra.mxu0 0.0
        %1902 = vmatprep.subr.mxu0 0.0
        %1903 = vmatpush1.msra.mxu0 0.0
        %1904 = vmatprep.subr.mxu0 0.0
        %1905 = vmatpush1.msra.mxu0 0.0
        %1906 = vmatprep.subr.mxu0 0.0
        %1907 = vmatpush1.msra.mxu0 0.0
        %1908 = vmatprep.subr.mxu0 0.0
        %1909 = vmatpush1.msra.mxu0 0.0
        %1910 = vmatprep.subr.mxu0 0.0
        %1911 = vmatpush1.msra.mxu0 0.0
        %1912 = vmatprep.subr.mxu0 0.0
        %1913 = vmatpush1.msra.mxu0 0.0
        %1914 = vmatprep.subr.mxu0 0.0
        %1915 = vmatpush1.msra.mxu0 0.0
        %1916 = vmatprep.subr.mxu0 0.0
        %1917 = vmatpush1.msra.mxu0 0.0
        %1918 = vmatprep.subr.mxu0 0.0
        %1919 = vmatpush1.msra.mxu0 0.0
        %1920 = vmatprep.subr.mxu0 0.0
        %1921 = vmatpush1.msra.mxu0 0.0
        %1922 = vmatprep.subr.mxu0 0.0
        %1923 = vmatpush1.msra.mxu0 0.0
        %1924 = vmatprep.subr.mxu0 0.0
        %1925 = vmatpush1.msra.mxu0 0.0
        %1926 = vmatprep.subr.mxu0 0.0
        %1927 = vmatpush1.msra.mxu0 0.0
        %1928 = vmatprep.subr.mxu0 0.0
        %1929 = vmatpush1.msra.mxu0 0.0
        %1930 = vmatprep.subr.mxu0 0.0
        %1931 = vmatpush1.msra.mxu0 0.0
        %1932 = vmatprep.subr.mxu0 0.0
        %1933 = vmatpush1.msra.mxu0 0.0
        %1934 = vmatprep.subr.mxu0 0.0
        %1935 = vmatpush1.msra.mxu0 0.0
        %1936 = vmatprep.subr.mxu0 0.0
        %1937 = vmatpush1.msra.mxu0 0.0
        %1938 = vmatprep.subr.mxu0 0.0
        %1939 = vmatpush1.msra.mxu0 0.0
        %1940 = vmatprep.subr.mxu0 0.0
        %1941 = vmatpush1.msra.mxu0 0.0
        %1942 = vmatprep.subr.mxu0 0.0
        %1943 = vmatpush1.msra.mxu0 0.0
        %1944 = vmatprep.subr.mxu0 0.0
        %1945 = vmatpush1.msra.mxu0 0.0
        %1946 = vmatprep.subr.mxu0 0.0
        %1947 = vmatpush1.msra.mxu0 0.0
        %1948 = vmatprep.subr.mxu0 0.0
        %1949 = vmatpush1.msra.mxu0 0.0
        %1950 = vmatprep.subr.mxu0 0.0
        %1951 = vmatpush1.msra.mxu0 0.0
        %1952 = vmatprep.subr.mxu0 0.0
        %1953 = vmatpush1.msra.mxu0 0.0
        %1954 = vmatprep.mubr.f32.mxu0 0.0
        %1955 = vmatmul.mubr.f32.gmra.mrb[0].mxu0 %v1888
        %v1956 = vpop.f32.mrb[0].mxu0
        %v1957 = vadd.f32 0.0, %v1956
        %v1958 = vpop.f32.mrb[0].mxu0
        %1959 = vdwg.mxu0
        %v1961 = vsel %vm1132, %v1732, 0
        %1963 = vmatprep.subr.mxu0 0.0
        %1964 = vmatpush1.msra.mxu0 %v1740
        %1965 = vmatprep.subr.mxu0 0.0
        %1966 = vmatpush1.msra.mxu0 0.0
        %1967 = vmatprep.subr.mxu0 0.0
        %1968 = vmatpush1.msra.mxu0 0.0
        %1969 = vmatprep.subr.mxu0 0.0
        %1970 = vmatpush1.msra.mxu0 0.0
        %1971 = vmatprep.subr.mxu0 0.0
        %1972 = vmatpush1.msra.mxu0 0.0
        %1973 = vmatprep.subr.mxu0 0.0
        %1974 = vmatpush1.msra.mxu0 0.0
        %1975 = vmatprep.subr.mxu0 0.0
        %1976 = vmatpush1.msra.mxu0 0.0
        %1977 = vmatprep.subr.mxu0 0.0
        %1978 = vmatpush1.msra.mxu0 0.0
        %1979 = vmatprep.subr.mxu0 0.0
        %1980 = vmatpush1.msra.mxu0 0.0
        %1981 = vmatprep.subr.mxu0 0.0
        %1982 = vmatpush1.msra.mxu0 0.0
        %1983 = vmatprep.subr.mxu0 0.0
        %1984 = vmatpush1.msra.mxu0 0.0
        %1985 = vmatprep.subr.mxu0 0.0
        %1986 = vmatpush1.msra.mxu0 0.0
        %1987 = vmatprep.subr.mxu0 0.0
        %1988 = vmatpush1.msra.mxu0 0.0
        %1989 = vmatprep.subr.mxu0 0.0
        %1990 = vmatpush1.msra.mxu0 0.0
        %1991 = vmatprep.subr.mxu0 0.0
        %1992 = vmatpush1.msra.mxu0 0.0
        %1993 = vmatprep.subr.mxu0 0.0
        %1994 = vmatpush1.msra.mxu0 0.0
        %1995 = vmatprep.subr.mxu0 0.0
        %1996 = vmatpush1.msra.mxu0 0.0
        %1997 = vmatprep.subr.mxu0 0.0
        %1998 = vmatpush1.msra.mxu0 0.0
        %1999 = vmatprep.subr.mxu0 0.0
        %2000 = vmatpush1.msra.mxu0 0.0
        %2001 = vmatprep.subr.mxu0 0.0
        %2002 = vmatpush1.msra.mxu0 0.0
        %2003 = vmatprep.subr.mxu0 0.0
        %2004 = vmatpush1.msra.mxu0 0.0
        %2005 = vmatprep.subr.mxu0 0.0
        %2006 = vmatpush1.msra.mxu0 0.0
        %2007 = vmatprep.subr.mxu0 0.0
        %2008 = vmatpush1.msra.mxu0 0.0
        %2009 = vmatprep.subr.mxu0 0.0
        %2010 = vmatpush1.msra.mxu0 0.0
        %2011 = vmatprep.subr.mxu0 0.0
        %2012 = vmatpush1.msra.mxu0 0.0
        %2013 = vmatprep.subr.mxu0 0.0
        %2014 = vmatpush1.msra.mxu0 0.0
        %2015 = vmatprep.subr.mxu0 0.0
        %2016 = vmatpush1.msra.mxu0 0.0
        %2017 = vmatprep.subr.mxu0 0.0
        %2018 = vmatpush1.msra.mxu0 0.0
        %2019 = vmatprep.subr.mxu0 0.0
        %2020 = vmatpush1.msra.mxu0 0.0
        %2021 = vmatprep.subr.mxu0 0.0
        %2022 = vmatpush1.msra.mxu0 0.0
        %2023 = vmatprep.subr.mxu0 0.0
        %2024 = vmatpush1.msra.mxu0 0.0
        %2025 = vmatprep.subr.mxu0 0.0
        %2026 = vmatpush1.msra.mxu0 0.0
        %2027 = vmatprep.mubr.f32.mxu0 0.0
        %2028 = vmatmul.mubr.f32.gmra.mrb[0].mxu0 %v1961
        %v2029 = vpop.f32.mrb[0].mxu0
        %v2030 = vadd.f32 0.0, %v2029
        %v2031 = vpop.f32.mrb[0].mxu0
        %2032 = vdwg.mxu0
        %v2033 = vld [vmem:[%s6] sm:$0xff]
        %v2034 = vld [vmem:[%s6 + $0x8] sm:$0xff]
        %v2035 = vld [vmem:[%s6 + $0x10] sm:$0xff]
        %v2036 = vld [vmem:[%s6 + $0x18] sm:$0xff]
        %v2038 = vsel %vm1132, %v1811, 0
        %2040 = vmatprep.subr.mxu0 0.0
        %2041 = vmatpush1.msra.mxu0 %v2033
        %2042 = vmatprep.subr.mxu0 0.0
        %2043 = vmatpush1.msra.mxu0 0.0
        %2044 = vmatprep.subr.mxu0 0.0
        %2045 = vmatpush1.msra.mxu0 0.0
        %2046 = vmatprep.subr.mxu0 0.0
        %2047 = vmatpush1.msra.mxu0 0.0
        %2048 = vmatprep.subr.mxu0 0.0
        %2049 = vmatpush1.msra.mxu0 0.0
        %2050 = vmatprep.subr.mxu0 0.0
        %2051 = vmatpush1.msra.mxu0 0.0
        %2052 = vmatprep.subr.mxu0 0.0
        %2053 = vmatpush1.msra.mxu0 0.0
        %2054 = vmatprep.subr.mxu0 0.0
        %2055 = vmatpush1.msra.mxu0 0.0
        %2056 = vmatprep.subr.mxu0 0.0
        %2057 = vmatpush1.msra.mxu0 0.0
        %2058 = vmatprep.subr.mxu0 0.0
        %2059 = vmatpush1.msra.mxu0 0.0
        %2060 = vmatprep.subr.mxu0 0.0
        %2061 = vmatpush1.msra.mxu0 0.0
        %2062 = vmatprep.subr.mxu0 0.0
        %2063 = vmatpush1.msra.mxu0 0.0
        %2064 = vmatprep.subr.mxu0 0.0
        %2065 = vmatpush1.msra.mxu0 0.0
        %2066 = vmatprep.subr.mxu0 0.0
        %2067 = vmatpush1.msra.mxu0 0.0
        %2068 = vmatprep.subr.mxu0 0.0
        %2069 = vmatpush1.msra.mxu0 0.0
        %2070 = vmatprep.subr.mxu0 0.0
        %2071 = vmatpush1.msra.mxu0 0.0
        %2072 = vmatprep.subr.mxu0 0.0
        %2073 = vmatpush1.msra.mxu0 0.0
        %2074 = vmatprep.subr.mxu0 0.0
        %2075 = vmatpush1.msra.mxu0 0.0
        %2076 = vmatprep.subr.mxu0 0.0
        %2077 = vmatpush1.msra.mxu0 0.0
        %2078 = vmatprep.subr.mxu0 0.0
        %2079 = vmatpush1.msra.mxu0 0.0
        %2080 = vmatprep.subr.mxu0 0.0
        %2081 = vmatpush1.msra.mxu0 0.0
        %2082 = vmatprep.subr.mxu0 0.0
        %2083 = vmatpush1.msra.mxu0 0.0
        %2084 = vmatprep.subr.mxu0 0.0
        %2085 = vmatpush1.msra.mxu0 0.0
        %2086 = vmatprep.subr.mxu0 0.0
        %2087 = vmatpush1.msra.mxu0 0.0
        %2088 = vmatprep.subr.mxu0 0.0
        %2089 = vmatpush1.msra.mxu0 0.0
        %2090 = vmatprep.subr.mxu0 0.0
        %2091 = vmatpush1.msra.mxu0 0.0
        %2092 = vmatprep.subr.mxu0 0.0
        %2093 = vmatpush1.msra.mxu0 0.0
        %2094 = vmatprep.subr.mxu0 0.0
        %2095 = vmatpush1.msra.mxu0 0.0
        %2096 = vmatprep.subr.mxu0 0.0
        %2097 = vmatpush1.msra.mxu0 0.0
        %2098 = vmatprep.subr.mxu0 0.0
        %2099 = vmatpush1.msra.mxu0 0.0
        %2100 = vmatprep.subr.mxu0 0.0
        %2101 = vmatpush1.msra.mxu0 0.0
        %2102 = vmatprep.subr.mxu0 0.0
        %2103 = vmatpush1.msra.mxu0 0.0
        %2104 = vmatprep.mubr.f32.mxu0 0.0
        %2105 = vmatmul.mubr.f32.gmra.mrb[0].mxu0 %v2038
        %v2106 = vpop.f32.mrb[0].mxu0
        %v2107 = vadd.f32 0.0, %v2106
        %v2108 = vpop.f32.mrb[0].mxu0
        %2109 = vdwg.mxu0
        %v2111 = vsel %vm1132, %v1884, 0
        %2113 = vmatprep.subr.mxu0 0.0
        %2114 = vmatpush1.msra.mxu0 %v2034
        %2115 = vmatprep.subr.mxu0 0.0
        %2116 = vmatpush1.msra.mxu0 0.0
        %2117 = vmatprep.subr.mxu0 0.0
        %2118 = vmatpush1.msra.mxu0 0.0
        %2119 = vmatprep.subr.mxu0 0.0
        %2120 = vmatpush1.msra.mxu0 0.0
        %2121 = vmatprep.subr.mxu0 0.0
        %2122 = vmatpush1.msra.mxu0 0.0
        %2123 = vmatprep.subr.mxu0 0.0
        %2124 = vmatpush1.msra.mxu0 0.0
        %2125 = vmatprep.subr.mxu0 0.0
        %2126 = vmatpush1.msra.mxu0 0.0
        %2127 = vmatprep.subr.mxu0 0.0
        %2128 = vmatpush1.msra.mxu0 0.0
        %2129 = vmatprep.subr.mxu0 0.0
        %2130 = vmatpush1.msra.mxu0 0.0
        %2131 = vmatprep.subr.mxu0 0.0
        %2132 = vmatpush1.msra.mxu0 0.0
        %2133 = vmatprep.subr.mxu0 0.0
        %2134 = vmatpush1.msra.mxu0 0.0
        %2135 = vmatprep.subr.mxu0 0.0
        %2136 = vmatpush1.msra.mxu0 0.0
        %2137 = vmatprep.subr.mxu0 0.0
        %2138 = vmatpush1.msra.mxu0 0.0
        %2139 = vmatprep.subr.mxu0 0.0
        %2140 = vmatpush1.msra.mxu0 0.0
        %2141 = vmatprep.subr.mxu0 0.0
        %2142 = vmatpush1.msra.mxu0 0.0
        %2143 = vmatprep.subr.mxu0 0.0
        %2144 = vmatpush1.msra.mxu0 0.0
        %2145 = vmatprep.subr.mxu0 0.0
        %2146 = vmatpush1.msra.mxu0 0.0
        %2147 = vmatprep.subr.mxu0 0.0
        %2148 = vmatpush1.msra.mxu0 0.0
        %2149 = vmatprep.subr.mxu0 0.0
        %2150 = vmatpush1.msra.mxu0 0.0
        %2151 = vmatprep.subr.mxu0 0.0
        %2152 = vmatpush1.msra.mxu0 0.0
        %2153 = vmatprep.subr.mxu0 0.0
        %2154 = vmatpush1.msra.mxu0 0.0
        %2155 = vmatprep.subr.mxu0 0.0
        %2156 = vmatpush1.msra.mxu0 0.0
        %2157 = vmatprep.subr.mxu0 0.0
        %2158 = vmatpush1.msra.mxu0 0.0
        %2159 = vmatprep.subr.mxu0 0.0
        %2160 = vmatpush1.msra.mxu0 0.0
        %2161 = vmatprep.subr.mxu0 0.0
        %2162 = vmatpush1.msra.mxu0 0.0
        %2163 = vmatprep.subr.mxu0 0.0
        %2164 = vmatpush1.msra.mxu0 0.0
        %2165 = vmatprep.subr.mxu0 0.0
        %2166 = vmatpush1.msra.mxu0 0.0
        %2167 = vmatprep.subr.mxu0 0.0
        %2168 = vmatpush1.msra.mxu0 0.0
        %2169 = vmatprep.subr.mxu0 0.0
        %2170 = vmatpush1.msra.mxu0 0.0
        %2171 = vmatprep.subr.mxu0 0.0
        %2172 = vmatpush1.msra.mxu0 0.0
        %2173 = vmatprep.subr.mxu0 0.0
        %2174 = vmatpush1.msra.mxu0 0.0
        %2175 = vmatprep.subr.mxu0 0.0
        %2176 = vmatpush1.msra.mxu0 0.0
        %2177 = vmatprep.mubr.f32.mxu0 0.0
        %2178 = vmatmul.mubr.f32.gmra.mrb[0].mxu0 %v2111
        %v2179 = vpop.f32.mrb[0].mxu0
        %v2180 = vadd.f32 0.0, %v2179
        %v2181 = vpop.f32.mrb[0].mxu0
        %2182 = vdwg.mxu0
        %v2184 = vsel %vm1132, %v1957, 0
        %2186 = vmatprep.subr.mxu0 0.0
        %2187 = vmatpush1.msra.mxu0 %v2035
        %2188 = vmatprep.subr.mxu0 0.0
        %2189 = vmatpush1.msra.mxu0 0.0
        %2190 = vmatprep.subr.mxu0 0.0
        %2191 = vmatpush1.msra.mxu0 0.0
        %2192 = vmatprep.subr.mxu0 0.0
        %2193 = vmatpush1.msra.mxu0 0.0
        %2194 = vmatprep.subr.mxu0 0.0
        %2195 = vmatpush1.msra.mxu0 0.0
        %2196 = vmatprep.subr.mxu0 0.0
        %2197 = vmatpush1.msra.mxu0 0.0
        %2198 = vmatprep.subr.mxu0 0.0
        %2199 = vmatpush1.msra.mxu0 0.0
        %2200 = vmatprep.subr.mxu0 0.0
        %2201 = vmatpush1.msra.mxu0 0.0
        %2202 = vmatprep.subr.mxu0 0.0
        %2203 = vmatpush1.msra.mxu0 0.0
        %2204 = vmatprep.subr.mxu0 0.0
        %2205 = vmatpush1.msra.mxu0 0.0
        %2206 = vmatprep.subr.mxu0 0.0
        %2207 = vmatpush1.msra.mxu0 0.0
        %2208 = vmatprep.subr.mxu0 0.0
        %2209 = vmatpush1.msra.mxu0 0.0
        %2210 = vmatprep.subr.mxu0 0.0
        %2211 = vmatpush1.msra.mxu0 0.0
        %2212 = vmatprep.subr.mxu0 0.0
        %2213 = vmatpush1.msra.mxu0 0.0
        %2214 = vmatprep.subr.mxu0 0.0
        %2215 = vmatpush1.msra.mxu0 0.0
        %2216 = vmatprep.subr.mxu0 0.0
        %2217 = vmatpush1.msra.mxu0 0.0
        %2218 = vmatprep.subr.mxu0 0.0
        %2219 = vmatpush1.msra.mxu0 0.0
        %2220 = vmatprep.subr.mxu0 0.0
        %2221 = vmatpush1.msra.mxu0 0.0
        %2222 = vmatprep.subr.mxu0 0.0
        %2223 = vmatpush1.msra.mxu0 0.0
        %2224 = vmatprep.subr.mxu0 0.0
        %2225 = vmatpush1.msra.mxu0 0.0
        %2226 = vmatprep.subr.mxu0 0.0
        %2227 = vmatpush1.msra.mxu0 0.0
        %2228 = vmatprep.subr.mxu0 0.0
        %2229 = vmatpush1.msra.mxu0 0.0
        %2230 = vmatprep.subr.mxu0 0.0
        %2231 = vmatpush1.msra.mxu0 0.0
        %2232 = vmatprep.subr.mxu0 0.0
        %2233 = vmatpush1.msra.mxu0 0.0
        %2234 = vmatprep.subr.mxu0 0.0
        %2235 = vmatpush1.msra.mxu0 0.0
        %2236 = vmatprep.subr.mxu0 0.0
        %2237 = vmatpush1.msra.mxu0 0.0
        %2238 = vmatprep.subr.mxu0 0.0
        %2239 = vmatpush1.msra.mxu0 0.0
        %2240 = vmatprep.subr.mxu0 0.0
        %2241 = vmatpush1.msra.mxu0 0.0
        %2242 = vmatprep.subr.mxu0 0.0
        %2243 = vmatpush1.msra.mxu0 0.0
        %2244 = vmatprep.subr.mxu0 0.0
        %2245 = vmatpush1.msra.mxu0 0.0
        %2246 = vmatprep.subr.mxu0 0.0
        %2247 = vmatpush1.msra.mxu0 0.0
        %2248 = vmatprep.subr.mxu0 0.0
        %2249 = vmatpush1.msra.mxu0 0.0
        %2250 = vmatprep.mubr.f32.mxu0 0.0
        %2251 = vmatmul.mubr.f32.gmra.mrb[0].mxu0 %v2184
        %v2252 = vpop.f32.mrb[0].mxu0
        %v2253 = vadd.f32 0.0, %v2252
        %v2254 = vpop.f32.mrb[0].mxu0
        %2255 = vdwg.mxu0
        %v2257 = vsel %vm1132, %v2030, 0
        %2259 = vmatprep.subr.mxu0 0.0
        %2260 = vmatpush1.msra.mxu0 %v2036
        %2261 = vmatprep.subr.mxu0 0.0
        %2262 = vmatpush1.msra.mxu0 0.0
        %2263 = vmatprep.subr.mxu0 0.0
        %2264 = vmatpush1.msra.mxu0 0.0
        %2265 = vmatprep.subr.mxu0 0.0
        %2266 = vmatpush1.msra.mxu0 0.0
        %2267 = vmatprep.subr.mxu0 0.0
        %2268 = vmatpush1.msra.mxu0 0.0
        %2269 = vmatprep.subr.mxu0 0.0
        %2270 = vmatpush1.msra.mxu0 0.0
        %2271 = vmatprep.subr.mxu0 0.0
        %2272 = vmatpush1.msra.mxu0 0.0
        %2273 = vmatprep.subr.mxu0 0.0
        %2274 = vmatpush1.msra.mxu0 0.0
        %2275 = vmatprep.subr.mxu0 0.0
        %2276 = vmatpush1.msra.mxu0 0.0
        %2277 = vmatprep.subr.mxu0 0.0
        %2278 = vmatpush1.msra.mxu0 0.0
        %2279 = vmatprep.subr.mxu0 0.0
        %2280 = vmatpush1.msra.mxu0 0.0
        %2281 = vmatprep.subr.mxu0 0.0
        %2282 = vmatpush1.msra.mxu0 0.0
        %2283 = vmatprep.subr.mxu0 0.0
        %2284 = vmatpush1.msra.mxu0 0.0
        %2285 = vmatprep.subr.mxu0 0.0
        %2286 = vmatpush1.msra.mxu0 0.0
        %2287 = vmatprep.subr.mxu0 0.0
        %2288 = vmatpush1.msra.mxu0 0.0
        %2289 = vmatprep.subr.mxu0 0.0
        %2290 = vmatpush1.msra.mxu0 0.0
        %2291 = vmatprep.subr.mxu0 0.0
        %2292 = vmatpush1.msra.mxu0 0.0
        %2293 = vmatprep.subr.mxu0 0.0
        %2294 = vmatpush1.msra.mxu0 0.0
        %2295 = vmatprep.subr.mxu0 0.0
        %2296 = vmatpush1.msra.mxu0 0.0
        %2297 = vmatprep.subr.mxu0 0.0
        %2298 = vmatpush1.msra.mxu0 0.0
        %2299 = vmatprep.subr.mxu0 0.0
        %2300 = vmatpush1.msra.mxu0 0.0
        %2301 = vmatprep.subr.mxu0 0.0
        %2302 = vmatpush1.msra.mxu0 0.0
        %2303 = vmatprep.subr.mxu0 0.0
        %2304 = vmatpush1.msra.mxu0 0.0
        %2305 = vmatprep.subr.mxu0 0.0
        %2306 = vmatpush1.msra.mxu0 0.0
        %2307 = vmatprep.subr.mxu0 0.0
        %2308 = vmatpush1.msra.mxu0 0.0
        %2309 = vmatprep.subr.mxu0 0.0
        %2310 = vmatpush1.msra.mxu0 0.0
        %2311 = vmatprep.subr.mxu0 0.0
        %2312 = vmatpush1.msra.mxu0 0.0
        %2313 = vmatprep.subr.mxu0 0.0
        %2314 = vmatpush1.msra.mxu0 0.0
        %2315 = vmatprep.subr.mxu0 0.0
        %2316 = vmatpush1.msra.mxu0 0.0
        %2317 = vmatprep.subr.mxu0 0.0
        %2318 = vmatpush1.msra.mxu0 0.0
        %2319 = vmatprep.subr.mxu0 0.0
        %2320 = vmatpush1.msra.mxu0 0.0
        %2321 = vmatprep.subr.mxu0 0.0
        %2322 = vmatpush1.msra.mxu0 0.0
        %2323 = vmatprep.mubr.f32.mxu0 0.0
        %2324 = vmatmul.mubr.f32.gmra.mrb[0].mxu0 %v2257
        %v2325 = vpop.f32.mrb[0].mxu0
        %v2326 = vadd.f32 0.0, %v2325
        %v2327 = vpop.f32.mrb[0].mxu0
        %2328 = vdwg.mxu0
        %v2329 = vsel %vm1058, %v2107, 0.0
        %v2330 = vsel %vm1058, %v2180, 0.0
        %v2331 = vadd.f32 %v2329, %v2330
        %v2332 = vsel %vm1058, %v2253, 0.0
        %v2333 = vadd.f32 %v2331, %v2332
        %v2334 = vsel %vm1058, %v2326, 0.0
        %v2335 = vadd.f32 %v2333, %v2334
        %v2336 = vadd.f32 %v2335, %v427
        %v2337 = vsel %vm1058, %v2336, 0.0
        %2338 = vadd.xlane.f32.xlu0 %v2337
        %v2339 = vpop.xlane.xlu0 %2338
        %v2340 = vrcp.pop 32.0
        %v2341 = vmul.f32 %v2339, %v2340
        %v2342 = vsub.f32 %v2336, %v2341
        %v2343 = vmul.f32 %v2342, %v2342
        %v2344 = vsel %vm1058, %v2343, 0.0
        %2345 = vadd.xlane.f32.xlu0 %v2344
        %v2346 = vpop.xlane.xlu0 %2345
        %v2347 = vmul.f32 %v2346, %v2340
        %v2348 = vadd.f32 %v2347, 1e-05
        %v2349 = vrsqrt.pop %v2348
        %v2350 = vmul.f32 %v2342, %v2349
        %v2351 = vld [vmem:[%s7] sm:$0x1]
        %v2353 = vlaneseq
        %v2354 = vshrl.u32 %v2353, 7
        %v2355 = vsub.s32 0, %v2354
        %v2356 = vrot.slane %v2351, %v2355
        %v2358 = vmul.f32 %v2350, %v2356
        %v2359 = vld [vmem:[%s8] sm:$0x1]
        %v2361 = vlaneseq
        %v2362 = vshrl.u32 %v2361, 7
        %v2363 = vsub.s32 0, %v2362
        %v2364 = vrot.slane %v2359, %v2363
        %v2366 = vadd.f32 %v2358, %v2364
        %2367 = vst.msk [vmem:[%s404] sm:$0xff] %vm1058, %v2366
        %s2368 = sand.u32 %s256, 1
        %s2369 = scalar_lea.sflag [#allocation6], %s2368
        %s2370 = sand.u32 %s256, 1
        %s2371 = smul.addr %s2370, 8
        %s2372 = scalar_lea.vmem [#allocation5], %s2371
        %s2373 = sand.u32 %s284, 1
        %s2374 = scalar_lea.sflag [#allocation8], %s2373
        %s2375 = sand.u32 %s284, 1
        %s2376 = smul.addr %s2375, 32
        %s2377 = scalar_lea.vmem [#allocation7], %s2376
        // Predicated region
        $region61: #{tpu_custom_call.1} parent=55 // pred_check
          %p2378 = pneg %p266
        $region62: #{tpu_custom_call.1} parent=55 // pred_check_branch
          %2380 = sbr.rel (%p2378) target = $region64
        $region63: #{tpu_custom_call.1} parent=55 // pred_region
          %s2382 = ssub.s32 128, 128
          %2383 = vsyncadd %s2369, %s2382
          %s2384 = sadd.s32 %s33, %s32
          %s2385 = smul.addr %s2384, 128
          %s2386 = scalar_lea.hbm %s9, %s2385
          %s2388 = sshll.u32 %s2372, 4
          %s2389 = int_to_ptr.vmem [resolvable:$true] %s2388
          %2391 = dma.vmem_to_hbm [thread:$0]  %s2389, 128, %s2386, %s2369
        $region64: #{tpu_custom_call.1} parent=55 // pred_fallthru
          _
        // Predicated region
        $region65: #{tpu_custom_call.1} parent=55 // pred_check
          %p2392 = pneg %p294
        $region66: #{tpu_custom_call.1} parent=55 // pred_check_branch
          %2394 = sbr.rel (%p2392) target = $region68
        $region67: #{tpu_custom_call.1} parent=55 // pred_region
          %s2396 = ssub.s32 512, 512
          %2397 = vsyncadd %s2374, %s2396
          %s2398 = sadd.s32 %s33, %s32
          %s2399 = smul.addr %s2398, 128
          %s2400 = scalar_lea.hbm %s10, %s2399
          %s2401 = sshll.u32 %s2377, 4
          %s2402 = int_to_ptr.vmem [resolvable:$true] %s2401
          %2407 = dma.vmem_to_hbm [thread:$0]  %s2402, 512, %s2400, %s2374, 128, 256, 8
        $region68: #{tpu_custom_call.1} parent=55 // pred_fallthru
          _
      $region56: #{tpu_custom_call.1} parent=5 // pred_fallthru
        _
      %p2408 = scmp.le.s32.totalorder 2, %s23
      // Predicated region
      $region69: #{tpu_custom_call.1} parent=5 // pred_check
        %p2409 = pneg %p2408
      $region70: #{tpu_custom_call.1} parent=5 // pred_check_branch
        %2411 = sbr.rel (%p2409) target = $region72
      $region71: #{tpu_custom_call.1} parent=5 // pred_region
        %s2412 = ssub.s32 %s23, 2
        // Predicated region
        $region73: #{tpu_custom_call.1} parent=71 // pred_check
          %p2413 = pneg %p272
        $region74: #{tpu_custom_call.1} parent=71 // pred_check_branch
          %2415 = sbr.rel (%p2413) target = $region76
        $region75: #{tpu_custom_call.1} parent=71 // pred_region
          %s2416 = sand.u32 %s257, 1
          %s2417 = scalar_lea.sflag [#allocation6], %s2416
          %s2418 = sand.u32 %s257, 1
          %s2419 = smul.addr %s2418, 8
          %s2420 = scalar_lea.vmem [#allocation5], %s2419
          %2421 = dma.done %s2417, 128
        $region76: #{tpu_custom_call.1} parent=71 // pred_fallthru
          _
        // Predicated region
        $region77: #{tpu_custom_call.1} parent=71 // pred_check
          %p2422 = pneg %p300
        $region78: #{tpu_custom_call.1} parent=71 // pred_check_branch
          %2424 = sbr.rel (%p2422) target = $region80
        $region79: #{tpu_custom_call.1} parent=71 // pred_region
          %s2425 = sand.u32 %s285, 1
          %s2426 = scalar_lea.sflag [#allocation8], %s2425
          %s2427 = sand.u32 %s285, 1
          %s2428 = smul.addr %s2427, 32
          %s2429 = scalar_lea.vmem [#allocation7], %s2428
          %2430 = dma.done %s2426, 512
        $region80: #{tpu_custom_call.1} parent=71 // pred_fallthru
          _
      $region72: #{tpu_custom_call.1} parent=5 // pred_fallthru
        _
    $region6: #{tpu_custom_call.1} parent=1 // loop_footer
      %s27 = sadd.s32 1, %s23
    $region7: #{tpu_custom_call.1} parent=1 // loop_footer_branch
      %22 = sbr.rel target = $region3
    $region8: #{tpu_custom_call.1} parent=1 // loop_exit
      _
    %2431 = vsyncpa [#allocation6], 1
    %s2432 = scalar_lea.sflag [#allocation6], 1
    %2433 = vsyncpa %s2432, 1
    %2434 = vsyncpa [#allocation8], 1
    %s2435 = scalar_lea.sflag [#allocation8], 1
    %2436 = vsyncpa %s2435, 1

</llo_original>
